<compile_context>
chip_gen: v6e
topology: v6e:2x2x1
jax: 0.10.0
libtpu: 0.0.40
codegen_flags: <defaults>
</compile_context>

<pallas_src>
import functools
import jax
import jax.numpy as jnp
from jax.experimental import pallas as pl
from jax.experimental.pallas import tpu as pltpu


# ----------------------------------------------------------------------------- helpers
def _row_tile(rows, max_tile=1024):
    """Row tile for flattened-pixel axes: large tile, split in two when it would give grid=(1,)."""
    if rows <= 8:
        return rows
    t = min(rows, max_tile)
    if t == rows and rows % 16 == 0:
        t = rows // 2                      # guarantee >=2 grid steps for v7x megacore
    t = max(8, (t // 8) * 8)               # sublane (8) alignment for the block row dim
    return t


def _match_row_tile(n, max_tile=512):
    return n if n <= max_tile else max_tile


def _vmem_limit(block_bytes):
    return int(min(128 * 1024 * 1024, max(32 * 1024 * 1024, 3 * block_bytes)))


def _logaddexp(a, b):
    """logaddexp using only exp/log/max (guaranteed Mosaic lowering)."""
    m = jnp.maximum(a, b)
    return m + jnp.log(jnp.exp(a - m) + jnp.exp(b - m))


# ----------------------------------------------------------------------------- fused extractor kernel
def _extractor_kernel(patch_ref, w_embed_ref, b_embed_ref, w_heads_ref, b_heads_ref,
                      heads_ref, packed_ref, *, num_logits, desc_dim):
    hwid = heads_ref.shape[-1]

    # 8x8 stride-8 patch embed (== matmul) + ReLU; bf16 MXU operands, f32 accumulation
    patches = patch_ref[...].astype(jnp.bfloat16)
    w_e = w_embed_ref[...].astype(jnp.bfloat16)
    feats = jnp.dot(patches, w_e, preferred_element_type=jnp.float32) + b_embed_ref[...]
    feats = jnp.maximum(feats, 0.0)

    # fused detector + descriptor + feature-passthrough heads: one 256-lane MXU pass.
    # lanes [0,65): det logits, [128,128+D): raw desc, [192,192+F): identity*feats, rest zeros.
    heads = jnp.dot(feats.astype(jnp.bfloat16), w_heads_ref[...].astype(jnp.bfloat16),
                    preferred_element_type=jnp.float32) + b_heads_ref[...]
    heads_ref[...] = heads                                          # lane-dense, unmasked store

    lane = jax.lax.broadcasted_iota(jnp.int32, (1, hwid), 1)
    is_logit = lane < num_logits
    is_desc = jnp.logical_and(lane >= 128, lane < 128 + desc_dim)

    # 65-way channel softmax on the logit lanes (f32; reciprocal on the EUP)
    masked_logits = jnp.where(is_logit, heads, jnp.float32(-1e30))
    m = jnp.max(masked_logits, axis=-1, keepdims=True)
    e = jnp.where(is_logit, jnp.exp(heads - m), 0.0)
    denom = jnp.sum(e, axis=-1, keepdims=True)
    prob_slab = e * pl.reciprocal(denom, approx=True)

    # L2-normalized coarse descriptors on the descriptor lanes (f32)
    d = jnp.where(is_desc, heads, 0.0)
    sq = jnp.sum(d * d, axis=-1, keepdims=True)
    coarse_slab = d * jax.lax.rsqrt(sq + 1e-12)

    # disjoint lane supports -> one lane-dense packed slab, one unmasked store
    packed_ref[...] = prob_slab + coarse_slab


def extractor_heads(patches, params):
    """patches: [rows, C*64] -> (heads_slab [rows, 256], packed_slab [rows, 256]).
       heads_slab lanes: [0,65)=logits, [128,128+D)=raw desc, [192,192+F)=backbone feats.
       packed_slab lanes: [0,65)=probability, [128,128+D)=L2-normalized coarse desc."""
    rows, K = patches.shape
    F = params["feat_channels"]
    D = params["descriptor_dim"]
    HWID = params["head_width"]
    tm = _row_tile(rows)
    grid = (pl.cdiv(rows, tm),)
    kernel = functools.partial(_extractor_kernel, num_logits=65, desc_dim=D)
    return pl.pallas_call(
        kernel,
        out_shape=(
            jax.ShapeDtypeStruct((rows, HWID), jnp.float32),
            jax.ShapeDtypeStruct((rows, HWID), jnp.float32),
        ),
        grid=grid,
        in_specs=[
            pl.BlockSpec((tm, K), lambda i: (i, 0)),
            pl.BlockSpec((K, F), lambda i: (0, 0)),
            pl.BlockSpec((1, F), lambda i: (0, 0)),
            pl.BlockSpec((F, HWID), lambda i: (0, 0)),
            pl.BlockSpec((1, HWID), lambda i: (0, 0)),
        ],
        out_specs=(
            pl.BlockSpec((tm, HWID), lambda i: (i, 0)),
            pl.BlockSpec((tm, HWID), lambda i: (i, 0)),
        ),
        compiler_params=pltpu.CompilerParams(dimension_semantics=("parallel",)),
    )(patches, params["w_embed"], params["b_embed"].reshape(1, F),
      params["w_heads"], params["b_heads"].reshape(1, HWID))


# ----------------------------------------------------------------------------- matcher kernels
def _sim_lse_kernel(scal_ref, d0_ref, d1_ref, sim_ref, rlse_ref, clse_ref,
                    cmax_sc, csum_sc, *, n_rows, row_tile):
    r = pl.program_id(1)
    inv_temp = scal_ref[0]
    bin_score = scal_ref[1]

    # fold inv_temperature into the (small) d0 operand instead of the [TN, M] product
    d0 = (d0_ref[0] * inv_temp).astype(jnp.bfloat16)                # [TN, D]
    d1 = d1_ref[0].astype(jnp.bfloat16)                             # [M,  D]
    sim = jax.lax.dot_general(d0, d1, dimension_numbers=(((1,), (1,)), ((), ())),
                              preferred_element_type=jnp.float32)   # [TN, M]
    sim_ref[0] = sim

    # row logsumexp over interior columns, dustbin folded analytically
    rmax = jnp.max(sim, axis=-1, keepdims=True)
    rlse = rmax + jnp.log(jnp.sum(jnp.exp(sim - rmax), axis=-1, keepdims=True))
    rlse_ref[0] = _logaddexp(rlse, bin_score)

    # streaming (carried) column logsumexp across row blocks
    if n_rows % row_tile != 0:
        row_id = jax.lax.broadcasted_iota(jnp.int32, sim.shape, 0) + r * row_tile
        sim_c = jnp.where(row_id < n_rows, sim, jnp.float32(-1e30))
    else:
        sim_c = sim
    bmax = jnp.max(sim_c, axis=0, keepdims=True)                    # [1, M]

    @pl.when(r == 0)
    def _():
        cmax_sc[...] = bmax
        csum_sc[...] = jnp.sum(jnp.exp(sim_c - bmax), axis=0, keepdims=True)

    @pl.when(r > 0)
    def _():
        new_max = jnp.maximum(cmax_sc[...], bmax)
        csum_sc[...] = (csum_sc[...] * jnp.exp(cmax_sc[...] - new_max)
                        + jnp.sum(jnp.exp(sim_c - new_max), axis=0, keepdims=True))
        cmax_sc[...] = new_max

    @pl.when(r == pl.num_programs(1) - 1)
    def _():
        clse = cmax_sc[...] + jnp.log(csum_sc[...])
        clse_ref[0] = _logaddexp(clse, bin_score)


def _log_assignment_kernel(sim_ref, rlse_ref, clse_ref, la_ref):
    # interior dual-softmax log-assignment: 2*s - row_lse(+bin) - col_lse(+bin); lane-dense store
    la_ref[0] = 2.0 * sim_ref[0] - rlse_ref[0] - clse_ref[0]


def match_scores(desc0, desc1, params):
    """desc0: [B,N,D], desc1: [B,M,D] ->
       (similarity [B,N,M], la_interior [B,N,M], log_assignment [B,N+1,M+1])."""
    B, N, D = desc0.shape
    _, M, _ = desc1.shape
    TN = _match_row_tile(N)
    NRB = pl.cdiv(N, TN)
    scalars = jnp.stack([jnp.asarray(params["inv_temperature"], jnp.float32),
                         jnp.asarray(params["bin_score"], jnp.float32)])

    blk_a = 4 * (TN * D + M * D + TN * M + TN + M) + 8 * M
    blk_b = 4 * (2 * TN * M + TN + M)

    sim, rlse, clse = pl.pallas_call(
        functools.partial(_sim_lse_kernel, n_rows=N, row_tile=TN),
        out_shape=(jax.ShapeDtypeStruct((B, N, M), jnp.float32),
                   jax.ShapeDtypeStruct((B, N, 1), jnp.float32),
                   jax.ShapeDtypeStruct((B, 1, M), jnp.float32)),
        grid=(B, NRB),
        in_specs=[
            pl.BlockSpec(memory_space=pltpu.MemorySpace.SMEM),      # [inv_temp, bin_score]
            pl.BlockSpec((1, TN, D), lambda b, r: (b, r, 0)),
            pl.BlockSpec((1, M, D), lambda b, r: (b, 0, 0)),
        ],
        out_specs=(
            pl.BlockSpec((1, TN, M), lambda b, r: (b, r, 0)),
            pl.BlockSpec((1, TN, 1), lambda b, r: (b, r, 0)),
            pl.BlockSpec((1, 1, M), lambda b, r: (b, 0, 0)),
        ),
        scratch_shapes=[pltpu.VMEM((1, M), jnp.float32),            # running column max
                        pltpu.VMEM((1, M), jnp.float32)],           # running column sum-exp
        compiler_params=pltpu.CompilerParams(
            dimension_semantics=("parallel", "arbitrary"),
            vmem_limit_bytes=_vmem_limit(blk_a)),
    )(scalars, desc0, desc1)

    la_int = pl.pallas_call(
        _log_assignment_kernel,
        out_shape=jax.ShapeDtypeStruct((B, N, M), jnp.float32),
        grid=(B, NRB),
        in_specs=[
            pl.BlockSpec((1, TN, M), lambda b, r: (b, r, 0)),
            pl.BlockSpec((1, TN, 1), lambda b, r: (b, r, 0)),
            pl.BlockSpec((1, 1, M), lambda b, r: (b, 0, 0)),
        ],
        out_specs=pl.BlockSpec((1, TN, M), lambda b, r: (b, r, 0)),
        compiler_params=pltpu.CompilerParams(
            dimension_semantics=("parallel", "parallel"),
            vmem_limit_bytes=_vmem_limit(blk_b)),
    )(sim, rlse, clse)

    # dustbin row / column / corner assembled analytically in XLA (tiny tensors)
    bin_score = jnp.asarray(params["bin_score"], jnp.float32)
    log_np1 = jnp.log(jnp.float32(N + 1))
    log_mp1 = jnp.log(jnp.float32(M + 1))
    bin_col = bin_score - rlse - log_np1                            # [B, N, 1]
    bin_row = bin_score - clse - log_mp1                            # [B, 1, M]
    corner = jnp.broadcast_to((-(log_np1 + log_mp1)).reshape(1, 1, 1), (B, 1, 1))
    top = jnp.concatenate([la_int, bin_col], axis=2)                # [B, N, M+1]
    bot = jnp.concatenate([bin_row, corner], axis=2)                # [B, 1, M+1]
    log_assignment = jnp.concatenate([top, bot], axis=1)            # [B, N+1, M+1]
    return sim, la_int, log_assignment


# ----------------------------------------------------------------------------- parameters
def init_params(key, in_ch=1, feat_channels=32, descriptor_dim=64):
    F, D = feat_channels, descriptor_dim
    assert F <= 64 and D <= 64, "lane-packed 256-wide head assumes F<=64 and D<=64"
    k = jax.random.split(key, 6)
    s = 0.1
    w_det = s * jax.random.normal(k[2], (F, 65), jnp.float32)
    b_det = s * jax.random.normal(k[3], (65,), jnp.float32)
    w_desc = s * jax.random.normal(k[4], (F, D), jnp.float32)
    b_desc = s * jax.random.normal(k[5], (D,), jnp.float32)
    # lane-packed fused head, padded to 256 lanes (every output store unmasked):
    #   det logits in lanes [0,65), descriptors in [128,128+D), identity passthrough of the
    #   backbone features in [192,192+F) (reuses the same MXU pass; F=32 underfills it anyway).
    HWID = 256
    w_heads = jnp.zeros((F, HWID), jnp.float32)
    w_heads = (w_heads.at[:, :65].set(w_det)
                      .at[:, 128:128 + D].set(w_desc)
                      .at[:, 192:192 + F].set(jnp.eye(F, dtype=jnp.float32)))
    b_heads = jnp.zeros((HWID,), jnp.float32)
    b_heads = b_heads.at[:65].set(b_det).at[128:128 + D].set(b_desc)
    return dict(
        w_embed=s * jax.random.normal(k[0], (in_ch * 64, F), jnp.float32),
        b_embed=s * jax.random.normal(k[1], (F,), jnp.float32),
        w_heads=w_heads,
        b_heads=b_heads,
        bin_score=jnp.float32(1.0),
        inv_temperature=jnp.float32(10.0),
        feat_channels=F,
        descriptor_dim=D,
        head_width=HWID,
        sparse_k=32,
    )


# ----------------------------------------------------------------------------- extractor glue
def _patchify(image):
    B, C, H, W = image.shape
    Hc, Wc = H // 8, W // 8
    return (image.reshape(B, C, Hc, 8, Wc, 8)
            .transpose(0, 2, 4, 1, 3, 5)
            .reshape(B * Hc * Wc, C * 64))


def _postprocess_image(heads_flat, packed_flat, img_shape, params):
    B, C, H, W = img_shape
    Hc, Wc = H // 8, W // 8
    F = params["feat_channels"]
    D = params["descriptor_dim"]

    logits_flat = heads_flat[:, :65]
    raw_flat = heads_flat[:, 128:128 + D]
    feats_flat = heads_flat[:, 192:192 + F]     # bf16-rounded backbone feats (identity passthrough)
    prob_flat = packed_flat[:, :65]
    coarse_flat = packed_flat[:, 128:128 + D]

    backbone_feats = feats_flat.reshape(B, Hc, Wc, F).transpose(0, 3, 1, 2)
    logits = logits_flat.reshape(B, Hc, Wc, 65).transpose(0, 3, 1, 2)
    raw_descriptors = raw_flat.reshape(B, Hc, Wc, D).transpose(0, 3, 1, 2)
    probability = prob_flat.reshape(B, Hc, Wc, 65).transpose(0, 3, 1, 2)
    coarse_descriptors = coarse_flat.reshape(B, Hc, Wc, D).transpose(0, 3, 1, 2)

    # score: drop dustbin + pixel shuffle (r=8) -> [B, 1, H, W]
    prob_cells = prob_flat.reshape(B, Hc, Wc, 65)[..., :64].reshape(B, Hc, Wc, 8, 8)
    score_hw = prob_cells.transpose(0, 1, 3, 2, 4).reshape(B, H, W)
    score = score_hw[:, None]

    # 3x3 max-pool NMS
    pooled = jax.lax.reduce_window(score_hw, -jnp.inf, jax.lax.max,
                                   (1, 3, 3), (1, 1, 1), "SAME")
    nms = jnp.where(score_hw >= pooled, score_hw, 0.0)

    # dense descriptors: nearest x8 upsample of the already-normalized coarse descriptors
    coarse_img = coarse_flat.reshape(B, Hc, Wc, D)
    up = jnp.repeat(jnp.repeat(coarse_img, 8, axis=1), 8, axis=2)              # [B, H, W, D]
    normalized_descriptors = up.transpose(0, 3, 1, 2)                          # [B, D, H, W]
    dense_descriptors = up.reshape(B, H * W, D)                                # [B, H*W, D]

    # positions (x, y, score)
    ys, xs = jnp.meshgrid(jnp.arange(H, dtype=jnp.float32),
                          jnp.arange(W, dtype=jnp.float32), indexing="ij")
    xy = jnp.stack([xs.reshape(-1), ys.reshape(-1)], axis=-1)                  # [H*W, 2]
    dense_positions = jnp.concatenate(
        [jnp.broadcast_to(xy[None], (B, H * W, 2)),
         score_hw.reshape(B, H * W, 1)], axis=-1)                              # [B, H*W, 3]

    # sparse keypoints: fixed top-K over the score map, batched gather
    K = params["sparse_k"]
    _, topi = jax.lax.top_k(score_hw.reshape(B, H * W), K)
    sparse_desc = jnp.take_along_axis(dense_descriptors, topi[:, :, None], axis=1)
    sparse_pos = jnp.take_along_axis(dense_positions, topi[:, :, None], axis=1)
    sparse_descriptors = tuple(sparse_desc[b] for b in range(B))
    sparse_positions = tuple(sparse_pos[b] for b in range(B))

    return dict(
        image_size=(H, W),
        backbone_feats=backbone_feats,
        logits=logits,
        raw_descriptors=raw_descriptors,
        probability=probability,
        score=score,
        nms=nms,
        coarse_descriptors=coarse_descriptors,
        normalized_descriptors=normalized_descriptors,
        dense_descriptors=dense_descriptors,
        sparse_descriptors=sparse_descriptors,
        sparse_positions=sparse_positions,
        dense_positions=dense_positions,
        _coarse_desc_flat=coarse_flat.reshape(B, Hc * Wc, D),   # NHWC-flat for the matcher
    )


def image_keypoints_extractor(image, params, mask=None):
    """Single-image extractor (API parity). The fused forward below batches both images."""
    # TODO(synk): `mask` handling of the original ImageKeypointsExtractor is unspecified; ignored.
    heads, packed = extractor_heads(_patchify(image), params)
    return _postprocess_image(heads, packed, image.shape, params)


# ----------------------------------------------------------------------------- matcher
def matcher(feats0, feats1, params):
    B, D, Hc, Wc = feats0["coarse_descriptors"].shape
    N = Hc * Wc
    desc0 = feats0["_coarse_desc_flat"]                                        # [B, N, D]
    desc1 = feats1["_coarse_desc_flat"]                                        # [B, M, D]
    M = desc1.shape[1]

    # coarse keypoints: cell centers + max cell probability
    ys, xs = jnp.meshgrid(jnp.arange(Hc, dtype=jnp.float32) * 8 + 4,
                          jnp.arange(Wc, dtype=jnp.float32) * 8 + 4, indexing="ij")
    xy = jnp.stack([xs.reshape(-1), ys.reshape(-1)], axis=-1)                  # [N, 2]

    def coarse_kpts(feats):
        p = feats["probability"][:, :64]                                       # [B, 64, Hc, Wc]
        cell_score = jnp.max(p, axis=1).reshape(B, -1, 1)
        return jnp.concatenate([jnp.broadcast_to(xy[None], (B, N, 2)), cell_score], axis=-1)

    kpts0 = coarse_kpts(feats0)
    kpts1 = coarse_kpts(feats1)

    similarity, la_int, log_assignment = match_scores(desc0, desc1, params)

    assignment = jnp.exp(la_int)                                               # interior only
    matches0 = jnp.argmax(assignment, axis=2)                                  # (B, N)
    matches1 = jnp.argmax(assignment, axis=1)                                  # (B, M)
    matching_scores0 = jnp.max(assignment, axis=2)
    matching_scores1 = jnp.max(assignment, axis=1)
    matched_kpts0 = kpts0                                                      # (B, N, 3)
    matched_kpts1 = jnp.take_along_axis(kpts1, matches0[..., None], axis=1)    # (B, N, 3)

    return dict(
        matches0=matches0,
        matches1=matches1,
        matching_scores0=matching_scores0,
        matching_scores1=matching_scores1,
        matched_kpts0=matched_kpts0,
        matched_kpts1=matched_kpts1,
        similarity=similarity,
        log_assignment=log_assignment,
    )


# ----------------------------------------------------------------------------- module forward
def image_image_matcher_forward(image0, image1, params, mask=None):
    # TODO(synk): pretrain_stage1/2 checkpoint loading (torch.load) has no Pallas equivalent;
    # weights are deterministic synthetic initializations instead.
    # Both images share one extractor pallas_call (rows concatenated) to halve launch/pipeline cost.
    p0 = _patchify(image0)
    p1 = _patchify(image1)
    r0 = p0.shape[0]
    heads, packed = extractor_heads(jnp.concatenate([p0, p1], axis=0), params)
    image_feats0 = _postprocess_image(heads[:r0], packed[:r0], image0.shape, params)
    image_feats1 = _postprocess_image(heads[r0:], packed[r0:], image1.shape, params)
    matches = matcher(image_feats0, image_feats1, params)
    return image_feats0, image_feats1, matches


# ----------------------------------------------------------------------------- main
if __name__ == "__main__":
    B, C, H, W = 2, 1, 64, 64
    key = jax.random.PRNGKey(0)
    k0, k1, kp = jax.random.split(key, 3)
    image0 = jax.random.uniform(k0, (B, C, H, W), jnp.float32)
    image1 = jax.random.uniform(k1, (B, C, H, W), jnp.float32)

    params = init_params(kp, in_ch=C, feat_channels=32, descriptor_dim=64)

    out = image_image_matcher_forward(image0, image1, params)
    out = jax.block_until_ready(out)

    feats0, feats1, matches = out
    Hc, Wc = H // 8, W // 8
    assert feats0["backbone_feats"].shape == (B, 32, Hc, Wc)
    assert feats0["logits"].shape == (B, 65, Hc, Wc)
    assert feats0["probability"].shape == (B, 65, Hc, Wc)
    assert feats0["raw_descriptors"].shape == (B, 64, Hc, Wc)
    assert feats0["coarse_descriptors"].shape == (B, 64, Hc, Wc)
    assert feats0["score"].shape == (B, 1, H, W)
    assert feats0["nms"].shape == (B, H, W)
    assert feats0["dense_descriptors"].shape == (B, H * W, 64)
    assert feats0["normalized_descriptors"].shape == (B, 64, H, W)
    assert feats0["dense_positions"].shape == (B, H * W, 3)
    assert matches["similarity"].shape == (B, Hc * Wc, Hc * Wc)
    assert matches["log_assignment"].shape == (B, Hc * Wc + 1, Hc * Wc + 1)
    assert matches["matched_kpts1"].shape == (B, Hc * Wc, 3)
    assert bool(jnp.all(jnp.isfinite(matches["log_assignment"])))
    assert bool(jnp.all(jnp.isfinite(feats0["probability"])))
    print("KERNEL_OK")
</pallas_src>

<mosaic_0001>
module attributes {stable_mosaic.version = 11 : i64} {
  func.func @_extractor_kernel(%arg0: i32, %arg1: memref<128x64xf32, #tpu.memory_space<vmem>>, %arg2: memref<64x32xf32, #tpu.memory_space<vmem>>, %arg3: memref<1x32xf32, #tpu.memory_space<vmem>>, %arg4: memref<32x256xf32, #tpu.memory_space<vmem>>, %arg5: memref<1x256xf32, #tpu.memory_space<vmem>>, %arg6: memref<128x256xf32, #tpu.memory_space<vmem>>, %arg7: memref<128x256xf32, #tpu.memory_space<vmem>>) attributes {dimension_semantics = [#tpu.dimension_semantics<parallel>], iteration_bounds = array<i64: 2>, scalar_prefetch = 0 : i64, scratch_operands = 0 : i64, tpu.core_type = #tpu.core_type<tc>, window_params = [{transform_indices = @transform_0, window_bounds = array<i64: 128, 64>}, {pipeline_mode = #tpu.pipeline_mode<synchronous>, transform_indices = @transform_1, window_bounds = array<i64: 64, 32>}, {pipeline_mode = #tpu.pipeline_mode<synchronous>, transform_indices = @transform_2, window_bounds = array<i64: 1, 32>}, {pipeline_mode = #tpu.pipeline_mode<synchronous>, transform_indices = @transform_3, window_bounds = array<i64: 32, 256>}, {pipeline_mode = #tpu.pipeline_mode<synchronous>, transform_indices = @transform_4, window_bounds = array<i64: 1, 256>}, {transform_indices = @transform_5, window_bounds = array<i64: 128, 256>}, {transform_indices = @transform_6, window_bounds = array<i64: 128, 256>}]} {
    %c0 = arith.constant 0 : index
    %c0_0 = arith.constant 0 : index
    %0 = vector.load %arg1[%c0, %c0_0] : memref<128x64xf32, #tpu.memory_space<vmem>>, vector<128x64xf32>
    %1 = arith.truncf %0 : vector<128x64xf32> to vector<128x64xbf16>
    %c0_1 = arith.constant 0 : index
    %c0_2 = arith.constant 0 : index
    %2 = vector.load %arg2[%c0_1, %c0_2] : memref<64x32xf32, #tpu.memory_space<vmem>>, vector<64x32xf32>
    %3 = arith.truncf %2 : vector<64x32xf32> to vector<64x32xbf16>
    %cst = arith.constant dense<0.000000e+00> : vector<128x32xf32>
    %4 = tpu.matmul %1, %3, %cst {dimension_numbers = #tpu.dot_dimension_numbers<[1], [0], [0], [1], [0, 0, 1, 1], [], []>} : vector<128x64xbf16>, vector<64x32xbf16>, vector<128x32xf32> -> vector<128x32xf32>
    %c0_3 = arith.constant 0 : index
    %c0_4 = arith.constant 0 : index
    %5 = vector.load %arg3[%c0_3, %c0_4] : memref<1x32xf32, #tpu.memory_space<vmem>>, vector<1x32xf32>
    %6 = vector.broadcast %5 : vector<1x32xf32> to vector<128x32xf32>
    %7 = arith.addf %4, %6 : vector<128x32xf32>
    %cst_5 = arith.constant 0.000000e+00 : f32
    %8 = vector.broadcast %cst_5 : f32 to vector<128x32xf32>
    %9 = arith.maximumf %7, %8 : vector<128x32xf32>
    %10 = arith.truncf %9 : vector<128x32xf32> to vector<128x32xbf16>
    %c0_6 = arith.constant 0 : index
    %c0_7 = arith.constant 0 : index
    %11 = vector.load %arg4[%c0_6, %c0_7] : memref<32x256xf32, #tpu.memory_space<vmem>>, vector<32x256xf32>
    %12 = arith.truncf %11 : vector<32x256xf32> to vector<32x256xbf16>
    %cst_8 = arith.constant dense<0.000000e+00> : vector<128x256xf32>
    %13 = tpu.matmul %10, %12, %cst_8 {dimension_numbers = #tpu.dot_dimension_numbers<[1], [0], [0], [1], [0, 0, 1, 1], [], []>} : vector<128x32xbf16>, vector<32x256xbf16>, vector<128x256xf32> -> vector<128x256xf32>
    %c0_9 = arith.constant 0 : index
    %c0_10 = arith.constant 0 : index
    %14 = vector.load %arg5[%c0_9, %c0_10] : memref<1x256xf32, #tpu.memory_space<vmem>>, vector<1x256xf32>
    %15 = vector.broadcast %14 : vector<1x256xf32> to vector<128x256xf32>
    %16 = arith.addf %13, %15 : vector<128x256xf32>
    %c0_11 = arith.constant 0 : index
    %c0_12 = arith.constant 0 : index
    %17 = vector.load %arg6[%c0_11, %c0_12] : memref<128x256xf32, #tpu.memory_space<vmem>>, vector<128x256xf32>
    tpu.vector_store %arg6[%c0_11, %c0_12], %16 {strides = array<i32>} : memref<128x256xf32, #tpu.memory_space<vmem>>, vector<128x256xf32>,
    %18 = tpu.iota {dimensions = array<i32: 1>} : vector<1x256xi32>
    %c65_i32 = arith.constant 65 : i32
    %19 = vector.broadcast %c65_i32 : i32 to vector<1x256xi32>
    %20 = arith.cmpi slt, %18, %19 : vector<1x256xi32>
    %c128_i32 = arith.constant 128 : i32
    %21 = vector.broadcast %c128_i32 : i32 to vector<1x256xi32>
    %22 = arith.cmpi sge, %18, %21 : vector<1x256xi32>
    %c192_i32 = arith.constant 192 : i32
    %23 = vector.broadcast %c192_i32 : i32 to vector<1x256xi32>
    %24 = arith.cmpi slt, %18, %23 : vector<1x256xi32>
    %25 = arith.andi %22, %24 : vector<1x256xi1>
    %cst_13 = arith.constant -1.000000e+30 : f32
    %26 = vector.shape_cast %20 : vector<1x256xi1> to vector<1x256xi1>
    %27 = vector.broadcast %26 : vector<1x256xi1> to vector<128x256xi1>
    %28 = vector.broadcast %cst_13 : f32 to vector<128x256xf32>
    %29 = arith.select %27, %16, %28 : vector<128x256xi1>, vector<128x256xf32>
    %cst_14 = arith.constant dense<0xFF800000> : vector<128xf32>
    %30 = vector.multi_reduction <maximumf>, %29, %cst_14 [1] : vector<128x256xf32> to vector<128xf32>
    %31 = vector.shape_cast %30 : vector<128xf32> to vector<128x1xf32>
    %32 = vector.broadcast %31 : vector<128x1xf32> to vector<128x256xf32>
    %33 = arith.subf %16, %32 : vector<128x256xf32>
    %34 = math.exp %33 : vector<128x256xf32>
    %cst_15 = arith.constant 0.000000e+00 : f32
    %35 = vector.shape_cast %20 : vector<1x256xi1> to vector<1x256xi1>
    %36 = vector.broadcast %35 : vector<1x256xi1> to vector<128x256xi1>
    %37 = vector.broadcast %cst_15 : f32 to vector<128x256xf32>
    %38 = arith.select %36, %34, %37 : vector<128x256xi1>, vector<128x256xf32>
    %cst_16 = arith.constant dense<0.000000e+00> : vector<128xf32>
    %39 = vector.multi_reduction <add>, %38, %cst_16 [1] : vector<128x256xf32> to vector<128xf32>
    %40 = vector.shape_cast %39 : vector<128xf32> to vector<128x1xf32>
    %41 = tpu.reciprocal %40 {approx = true} : vector<128x1xf32> -> vector<128x1xf32>
    %42 = vector.broadcast %41 : vector<128x1xf32> to vector<128x256xf32>
    %43 = arith.mulf %38, %42 : vector<128x256xf32>
    %cst_17 = arith.constant 0.000000e+00 : f32
    %44 = vector.shape_cast %25 : vector<1x256xi1> to vector<1x256xi1>
    %45 = vector.broadcast %44 : vector<1x256xi1> to vector<128x256xi1>
    %46 = vector.broadcast %cst_17 : f32 to vector<128x256xf32>
    %47 = arith.select %45, %16, %46 : vector<128x256xi1>, vector<128x256xf32>
    %48 = arith.mulf %47, %47 : vector<128x256xf32>
    %cst_18 = arith.constant dense<0.000000e+00> : vector<128xf32>
    %49 = vector.multi_reduction <add>, %48, %cst_18 [1] : vector<128x256xf32> to vector<128xf32>
    %50 = vector.shape_cast %49 : vector<128xf32> to vector<128x1xf32>
    %cst_19 = arith.constant 9.99999996E-13 : f32
    %51 = vector.broadcast %cst_19 : f32 to vector<128x1xf32>
    %52 = arith.addf %50, %51 : vector<128x1xf32>
    %53 = math.rsqrt %52 : vector<128x1xf32>
    %54 = vector.broadcast %53 : vector<128x1xf32> to vector<128x256xf32>
    %55 = arith.mulf %47, %54 : vector<128x256xf32>
    %56 = arith.addf %43, %55 : vector<128x256xf32>
    %c0_20 = arith.constant 0 : index
    %c0_21 = arith.constant 0 : index
    %57 = vector.load %arg7[%c0_20, %c0_21] : memref<128x256xf32, #tpu.memory_space<vmem>>, vector<128x256xf32>
    tpu.vector_store %arg7[%c0_20, %c0_21], %56 {strides = array<i32>} : memref<128x256xf32, #tpu.memory_space<vmem>>, vector<128x256xf32>,
    return
  }
  func.func @transform_0(%arg0: i32) -> (i32, i32) {
    %c0_i32 = arith.constant 0 : i32
    %c0_i32_0 = arith.constant 0 : i32
    return %arg0, %c0_i32 : i32, i32
  }
  func.func @transform_1(%arg0: i32) -> (i32, i32) {
    %c0_i32 = arith.constant 0 : i32
    %c0_i32_0 = arith.constant 0 : i32
    %c0_i32_1 = arith.constant 0 : i32
    return %c0_i32, %c0_i32_0 : i32, i32
  }
  func.func @transform_2(%arg0: i32) -> (i32, i32) {
    %c0_i32 = arith.constant 0 : i32
    %c0_i32_0 = arith.constant 0 : i32
    %c0_i32_1 = arith.constant 0 : i32
    return %c0_i32, %c0_i32_0 : i32, i32
  }
  func.func @transform_3(%arg0: i32) -> (i32, i32) {
    %c0_i32 = arith.constant 0 : i32
    %c0_i32_0 = arith.constant 0 : i32
    %c0_i32_1 = arith.constant 0 : i32
    return %c0_i32, %c0_i32_0 : i32, i32
  }
  func.func @transform_4(%arg0: i32) -> (i32, i32) {
    %c0_i32 = arith.constant 0 : i32
    %c0_i32_0 = arith.constant 0 : i32
    %c0_i32_1 = arith.constant 0 : i32
    return %c0_i32, %c0_i32_0 : i32, i32
  }
  func.func @transform_5(%arg0: i32) -> (i32, i32) {
    %c0_i32 = arith.constant 0 : i32
    %c0_i32_0 = arith.constant 0 : i32
    return %arg0, %c0_i32 : i32, i32
  }
  func.func @transform_6(%arg0: i32) -> (i32, i32) {
    %c0_i32 = arith.constant 0 : i32
    %c0_i32_0 = arith.constant 0 : i32
    return %arg0, %c0_i32 : i32, i32
  }
}

</mosaic_0001>

<llo_original>
// kernel: tpu_custom_call.1
$region0: #{tpu_custom_call.1}
  #allocation0 [shape = 'u32[]', space=smem, size = 0x4, offset = 0x4, fixed_abs, tag = 'smem constant byte address 0x4 - core index']
  #allocation1 [shape = 'u32[144,128]{1,0:T(1,128)}', space=vmem, size = 0x12000, scoped, tag = 'internal scratch']
  %s0 = inlined_call_operand.vmem [shape: f32[256,64], index: 0, kind: input, shape index: {}]
  %s1 = inlined_call_operand.vmem [shape: f32[64,32], index: 1, kind: input, shape index: {}]
  %s2 = inlined_call_operand.vmem [shape: f32[1,32], index: 2, kind: input, shape index: {}]
  %s3 = inlined_call_operand.vmem [shape: f32[32,256], index: 3, kind: input, shape index: {}]
  %s4 = inlined_call_operand.vmem [shape: f32[1,256], index: 4, kind: input, shape index: {}]
  %s5 = inlined_call_operand.hbm [shape: f32[256,256], index: 5, kind: output, shape index: {0}]
  %s6 = inlined_call_operand.hbm [shape: f32[256,256], index: 6, kind: output, shape index: {1}]
  %7 = xla_tuple %s5, %s6
  %s8 = sld [smem:[#allocation0]]
  $region61: #{tpu_custom_call.1} parent=0
    _
  %s10 = ssub.s32 1, %s8
  %s11 = scalar_select 0, %s10, %s8
  $region1: #{tpu_custom_call.1} parent=0
    #allocation2 [shape = 'u8[262144]{0}', space=vmem, size = 0x40000, scoped, tag = 'output window, operand 0']
    #allocation3 [shape = 's32[2]{0}', space=sflag, size = 0x8, scoped, tag = 'scoped memory for tpu_custom_call.1']
    #allocation4 [shape = 'u8[262144]{0}', space=vmem, size = 0x40000, scoped, tag = 'output window, operand 1']
    #allocation5 [shape = 's32[2]{0}', space=sflag, size = 0x8, scoped, tag = 'scoped memory for tpu_custom_call.1']
    %12 = vsyncpa [#allocation3], 0
    %s13 = scalar_lea.sflag [#allocation3], 1
    %14 = vsyncpa %s13, 0
    %15 = vsyncpa [#allocation5], 0
    %s16 = scalar_lea.sflag [#allocation5], 1
    %17 = vsyncpa %s16, 0
    loop: start=0, step=1, limit=4
    $region2: #{tpu_custom_call.1} parent=1 // loop_pre_header
      _
    $region3: #{tpu_custom_call.1} parent=1 // loop_header
      %s19 = sphi 0, %s23
      %p20 = scmp.ge.s32.totalorder %s19, 4
      %s29 = sphi 0, %s31
      %s32 = sphi 0, %s29
      %s33 = sphi 0, %s32
      %s49 = sphi 0, %s33
      %s53 = sphi 0, %s53
      %s55 = sphi 0, %s53
      %s56 = sphi 0, %s55
      %s70 = sphi 0, %s56
      %s74 = sphi 0, %s74
      %s76 = sphi 0, %s74
      %s77 = sphi 0, %s76
      %s91 = sphi 0, %s77
      %s95 = sphi 0, %s95
      %s97 = sphi 0, %s95
      %s98 = sphi 0, %s97
      %s112 = sphi 0, %s98
      %s116 = sphi 0, %s116
      %s118 = sphi 0, %s116
      %s119 = sphi 0, %s118
      %s133 = sphi 0, %s119
      %s139 = sphi 0, %s141
      %s142 = sphi 0, %s139
      %s143 = sphi 0, %s142
      %s159 = sphi 0, %s143
      %s165 = sphi 0, %s167
      %s168 = sphi 0, %s165
      %s169 = sphi 0, %s168
      %s185 = sphi 0, %s169
    $region4: #{tpu_custom_call.1} parent=1 // loop_header_branch
      %22 = sbr.rel (%p20) target = $region8
    $region5: #{tpu_custom_call.1} parent=1 // loop_body
      %s24 = ssub.s32 %s19, 1
      %s25 = ssub.s32 %s19, 2
      %s26 = sadd.s32 %s19, 1
      %s27 = ssub.s32 %s19, %s26
      %p28 = scmp.eq.s32.totalorder %s27, 0
      %s30 = sadd.s32 %s29, 1
      %s31 = scalar_select %p28, %s29, %s30
      %p34 = pneg %p28
      %p35 = scmp.eq.s32.totalorder %s19, 1
      %p36 = por %p34, %p35
      %p37 = scmp.ne.s32.totalorder %s29, %s32
      %p38 = scmp.eq.s32.totalorder %s19, 0
      %p39 = por %p37, %p38
      %p40 = scmp.ne.s32.totalorder %s29, %s32
      %p41 = scmp.eq.s32.totalorder %s24, 1
      %p42 = por %p40, %p41
      %p43 = scmp.ne.s32.totalorder %s32, %s33
      %p44 = scmp.eq.s32.totalorder %s24, 0
      %p45 = por %p43, %p44
      %p46 = scmp.ne.s32.totalorder %s32, %s33
      %p47 = scmp.eq.s32.totalorder %s25, 1
      %p48 = por %p46, %p47
      %p50 = scmp.ne.s32.totalorder %s33, %s49
      %p51 = scmp.eq.s32.totalorder %s25, 0
      %p52 = por %p50, %p51
      %s54 = sadd.s32 %s53, 1
      %p57 = scmp.eq.s32.totalorder %s19, 1
      %p58 = scmp.ne.s32.totalorder %s53, %s55
      %p59 = scmp.eq.s32.totalorder %s19, 0
      %p60 = por %p58, %p59
      %p61 = scmp.ne.s32.totalorder %s53, %s55
      %p62 = scmp.eq.s32.totalorder %s24, 1
      %p63 = por %p61, %p62
      %p64 = scmp.ne.s32.totalorder %s55, %s56
      %p65 = scmp.eq.s32.totalorder %s24, 0
      %p66 = por %p64, %p65
      %p67 = scmp.ne.s32.totalorder %s55, %s56
      %p68 = scmp.eq.s32.totalorder %s25, 1
      %p69 = por %p67, %p68
      %p71 = scmp.ne.s32.totalorder %s56, %s70
      %p72 = scmp.eq.s32.totalorder %s25, 0
      %p73 = por %p71, %p72
      %s75 = sadd.s32 %s74, 1
      %p78 = scmp.eq.s32.totalorder %s19, 1
      %p79 = scmp.ne.s32.totalorder %s74, %s76
      %p80 = scmp.eq.s32.totalorder %s19, 0
      %p81 = por %p79, %p80
      %p82 = scmp.ne.s32.totalorder %s74, %s76
      %p83 = scmp.eq.s32.totalorder %s24, 1
      %p84 = por %p82, %p83
      %p85 = scmp.ne.s32.totalorder %s76, %s77
      %p86 = scmp.eq.s32.totalorder %s24, 0
      %p87 = por %p85, %p86
      %p88 = scmp.ne.s32.totalorder %s76, %s77
      %p89 = scmp.eq.s32.totalorder %s25, 1
      %p90 = por %p88, %p89
      %p92 = scmp.ne.s32.totalorder %s77, %s91
      %p93 = scmp.eq.s32.totalorder %s25, 0
      %p94 = por %p92, %p93
      %s96 = sadd.s32 %s95, 1
      %p99 = scmp.eq.s32.totalorder %s19, 1
      %p100 = scmp.ne.s32.totalorder %s95, %s97
      %p101 = scmp.eq.s32.totalorder %s19, 0
      %p102 = por %p100, %p101
      %p103 = scmp.ne.s32.totalorder %s95, %s97
      %p104 = scmp.eq.s32.totalorder %s24, 1
      %p105 = por %p103, %p104
      %p106 = scmp.ne.s32.totalorder %s97, %s98
      %p107 = scmp.eq.s32.totalorder %s24, 0
      %p108 = por %p106, %p107
      %p109 = scmp.ne.s32.totalorder %s97, %s98
      %p110 = scmp.eq.s32.totalorder %s25, 1
      %p111 = por %p109, %p110
      %p113 = scmp.ne.s32.totalorder %s98, %s112
      %p114 = scmp.eq.s32.totalorder %s25, 0
      %p115 = por %p113, %p114
      %s117 = sadd.s32 %s116, 1
      %p120 = scmp.eq.s32.totalorder %s19, 1
      %p121 = scmp.ne.s32.totalorder %s116, %s118
      %p122 = scmp.eq.s32.totalorder %s19, 0
      %p123 = por %p121, %p122
      %p124 = scmp.ne.s32.totalorder %s116, %s118
      %p125 = scmp.eq.s32.totalorder %s24, 1
      %p126 = por %p124, %p125
      %p127 = scmp.ne.s32.totalorder %s118, %s119
      %p128 = scmp.eq.s32.totalorder %s24, 0
      %p129 = por %p127, %p128
      %p130 = scmp.ne.s32.totalorder %s118, %s119
      %p131 = scmp.eq.s32.totalorder %s25, 1
      %p132 = por %p130, %p131
      %p134 = scmp.ne.s32.totalorder %s119, %s133
      %p135 = scmp.eq.s32.totalorder %s25, 0
      %p136 = por %p134, %p135
      %s137 = ssub.s32 %s19, %s26
      %p138 = scmp.eq.s32.totalorder %s137, 0
      %s140 = sadd.s32 %s139, 1
      %s141 = scalar_select %p138, %s139, %s140
      %p144 = pneg %p138
      %p145 = scmp.eq.s32.totalorder %s19, 1
      %p146 = por %p144, %p145
      %p147 = scmp.ne.s32.totalorder %s139, %s142
      %p148 = scmp.eq.s32.totalorder %s19, 0
      %p149 = por %p147, %p148
      %p150 = scmp.ne.s32.totalorder %s139, %s142
      %p151 = scmp.eq.s32.totalorder %s24, 1
      %p152 = por %p150, %p151
      %p153 = scmp.ne.s32.totalorder %s142, %s143
      %p154 = scmp.eq.s32.totalorder %s24, 0
      %p155 = por %p153, %p154
      %p156 = scmp.ne.s32.totalorder %s142, %s143
      %p157 = scmp.eq.s32.totalorder %s25, 1
      %p158 = por %p156, %p157
      %p160 = scmp.ne.s32.totalorder %s143, %s159
      %p161 = scmp.eq.s32.totalorder %s25, 0
      %p162 = por %p160, %p161
      %s163 = ssub.s32 %s19, %s26
      %p164 = scmp.eq.s32.totalorder %s163, 0
      %s166 = sadd.s32 %s165, 1
      %s167 = scalar_select %p164, %s165, %s166
      %p170 = pneg %p164
      %p171 = scmp.eq.s32.totalorder %s19, 1
      %p172 = por %p170, %p171
      %p173 = scmp.ne.s32.totalorder %s165, %s168
      %p174 = scmp.eq.s32.totalorder %s19, 0
      %p175 = por %p173, %p174
      %p176 = scmp.ne.s32.totalorder %s165, %s168
      %p177 = scmp.eq.s32.totalorder %s24, 1
      %p178 = por %p176, %p177
      %p179 = scmp.ne.s32.totalorder %s168, %s169
      %p180 = scmp.eq.s32.totalorder %s24, 0
      %p181 = por %p179, %p180
      %p182 = scmp.ne.s32.totalorder %s168, %s169
      %p183 = scmp.eq.s32.totalorder %s25, 1
      %p184 = por %p182, %p183
      %p186 = scmp.ne.s32.totalorder %s169, %s185
      %p187 = scmp.eq.s32.totalorder %s25, 0
      %p188 = por %p186, %p187
      %p189 = scmp.le.s32.totalorder 1, %s19
      %p190 = scmp.lt.s32.totalorder %s19, 3
      %p191 = pnand %p189, %p190
      %p192 = pneg %p191
      // Predicated region
      $region9: #{tpu_custom_call.1} parent=5 // pred_check
        _
      $region10: #{tpu_custom_call.1} parent=5 // pred_check_branch
        %194 = sbr.rel (%p191) target = $region12
      $region11: #{tpu_custom_call.1} parent=5 // pred_region
        %s195 = ssub.s32 %s19, 1
        // Predicated region
        $region13: #{tpu_custom_call.1} parent=11 // pred_check
          %p196 = pneg %p66
        $region14: #{tpu_custom_call.1} parent=11 // pred_check_branch
          %198 = sbr.rel (%p196) target = $region16
        $region15: #{tpu_custom_call.1} parent=11 // pred_region
          _
        $region16: #{tpu_custom_call.1} parent=11 // pred_fallthru
          _
        // Predicated region
        $region17: #{tpu_custom_call.1} parent=11 // pred_check
          %p199 = pneg %p87
        $region18: #{tpu_custom_call.1} parent=11 // pred_check_branch
          %201 = sbr.rel (%p199) target = $region20
        $region19: #{tpu_custom_call.1} parent=11 // pred_region
          _
        $region20: #{tpu_custom_call.1} parent=11 // pred_fallthru
          _
        // Predicated region
        $region21: #{tpu_custom_call.1} parent=11 // pred_check
          %p202 = pneg %p108
        $region22: #{tpu_custom_call.1} parent=11 // pred_check_branch
          %204 = sbr.rel (%p202) target = $region24
        $region23: #{tpu_custom_call.1} parent=11 // pred_region
          _
        $region24: #{tpu_custom_call.1} parent=11 // pred_fallthru
          _
        // Predicated region
        $region25: #{tpu_custom_call.1} parent=11 // pred_check
          %p205 = pneg %p129
        $region26: #{tpu_custom_call.1} parent=11 // pred_check_branch
          %207 = sbr.rel (%p205) target = $region28
        $region27: #{tpu_custom_call.1} parent=11 // pred_region
          _
        $region28: #{tpu_custom_call.1} parent=11 // pred_fallthru
          _
      $region12: #{tpu_custom_call.1} parent=5 // pred_fallthru
        _
      %p208 = scmp.lt.s32.totalorder %s19, 2
      // Predicated region
      $region29: #{tpu_custom_call.1} parent=5 // pred_check
        %p209 = pneg %p208
      $region30: #{tpu_custom_call.1} parent=5 // pred_check_branch
        %211 = sbr.rel (%p209) target = $region32
      $region31: #{tpu_custom_call.1} parent=5 // pred_region
        // Predicated region
        $region33: #{tpu_custom_call.1} parent=31 // pred_check
          %p212 = pneg %p39
        $region34: #{tpu_custom_call.1} parent=31 // pred_check_branch
          %214 = sbr.rel (%p212) target = $region36
        $region35: #{tpu_custom_call.1} parent=31 // pred_region
          %s215 = smul.u32 16, %s19
          %p216 = scmp.lt.s32.totalorder %s215, 31
          %s217 = scalar_select %p216, %s215, 31
          %s218 = smul.addr %s217, 8
          %s219 = scalar_lea.vmem %s0, %s218
          %s220 = smul.u32 16, %s19
        $region36: #{tpu_custom_call.1} parent=31 // pred_fallthru
          _
      $region32: #{tpu_custom_call.1} parent=5 // pred_fallthru
        _
      %p221 = scmp.le.s32.totalorder 1, %s19
      %p222 = scmp.lt.s32.totalorder %s19, 3
      %p223 = pnand %p221, %p222
      %p224 = pneg %p223
      // Predicated region
      $region37: #{tpu_custom_call.1} parent=5 // pred_check
        _
      $region38: #{tpu_custom_call.1} parent=5 // pred_check_branch
        %226 = sbr.rel (%p223) target = $region40
      $region39: #{tpu_custom_call.1} parent=5 // pred_region
        %s227 = ssub.s32 %s19, 1
        %s228 = smul.u32 16, %s24
        %p229 = scmp.lt.s32.totalorder %s228, 31
        %s230 = scalar_select %p229, %s228, 31
        %s231 = smul.addr %s230, 8
        %s232 = scalar_lea.vmem %s0, %s231
        %p233 = pneg %p45
        %p234 = pneg %p42
        %p235 = pneg %p66
        %p236 = pneg %p63
        %p237 = pneg %p87
        %p238 = pneg %p84
        %p239 = pneg %p108
        %p240 = pneg %p105
        %p241 = pneg %p129
        %p242 = pneg %p126
        %p243 = pneg %p155
        %p244 = pneg %p152
        %s245 = sand.u32 %s142, 1
        %s246 = scalar_lea.sflag [#allocation3], %s245
        %s247 = sand.u32 %s142, 1
        %s248 = smul.addr %s247, 256
        %s249 = scalar_lea.vmem [#allocation2], %s248
        %p250 = pneg %p181
        %p251 = pneg %p178
        %s252 = sand.u32 %s168, 1
        %s253 = scalar_lea.sflag [#allocation5], %s252
        %s254 = sand.u32 %s168, 1
        %s255 = smul.addr %s254, 256
        %s256 = scalar_lea.vmem [#allocation4], %s255
        %s257 = smul.u32 16, %s24
        %p258 = scmp.lt.s32.totalorder %s257, 31
        %s259 = scalar_select %p258, %s257, 31
        %s260 = smul.addr %s259, 8
        %s261 = scalar_lea.vmem %s0, %s260
        %s262 = smul.u32 16, %s24
        %s263 = smul.u32 16, %s24
        %s264 = smul.u32 16, %s24
        %v266 = vld [vmem:[%s261] sm:$0xff]
        %v267 = vld [vmem:[%s261 + $0x8] sm:$0xff]
        %v268 = vld [vmem:[%s261 + $0x10] sm:$0xff]
        %v269 = vld [vmem:[%s261 + $0x18] sm:$0xff]
        %v270 = vld [vmem:[%s261 + $0x20] sm:$0xff]
        %v271 = vld [vmem:[%s261 + $0x28] sm:$0xff]
        %v272 = vld [vmem:[%s261 + $0x30] sm:$0xff]
        %v273 = vld [vmem:[%s261 + $0x38] sm:$0xff]
        %v274 = vld [vmem:[%s261 + $0x40] sm:$0xff]
        %v275 = vld [vmem:[%s261 + $0x48] sm:$0xff]
        %v276 = vld [vmem:[%s261 + $0x50] sm:$0xff]
        %v277 = vld [vmem:[%s261 + $0x58] sm:$0xff]
        %v278 = vld [vmem:[%s261 + $0x60] sm:$0xff]
        %v279 = vld [vmem:[%s261 + $0x68] sm:$0xff]
        %v280 = vld [vmem:[%s261 + $0x70] sm:$0xff]
        %v281 = vld [vmem:[%s261 + $0x78] sm:$0xff]
        %v282 = vpack.c.bf16 %v267, %v266
        %v283 = vpack.c.bf16 %v269, %v268
        %v284 = vpack.c.bf16 %v271, %v270
        %v285 = vpack.c.bf16 %v273, %v272
        %v286 = vpack.c.bf16 %v275, %v274
        %v287 = vpack.c.bf16 %v277, %v276
        %v288 = vpack.c.bf16 %v279, %v278
        %v289 = vpack.c.bf16 %v281, %v280
        %v290 = vld [vmem:[%s1] sm:$0xff]
        %v291 = vld [vmem:[%s1 + $0x8] sm:$0xff]
        %v292 = vld [vmem:[%s1 + $0x10] sm:$0xff]
        %v293 = vld [vmem:[%s1 + $0x18] sm:$0xff]
        %v294 = vld [vmem:[%s1 + $0x20] sm:$0xff]
        %v295 = vld [vmem:[%s1 + $0x28] sm:$0xff]
        %v296 = vld [vmem:[%s1 + $0x30] sm:$0xff]
        %v297 = vld [vmem:[%s1 + $0x38] sm:$0xff]
        %v298 = vpack.c.bf16 %v291, %v290
        %v299 = vpack.c.bf16 %v293, %v292
        %v300 = vpack.c.bf16 %v295, %v294
        %v301 = vpack.c.bf16 %v297, %v296
        %v302 = vld [vmem:[%s2] sm:$0x1]
        %v304 = vlaneseq
        %v305 = vshrl.u32 %v304, 7
        %v306 = vsub.s32 0, %v305
        %v307 = vrot.slane %v302, %v306
        %vm309 = vcmask 523264
        %v311 = vsel %vm309, %v282, 0
        %v314 = vsel %vm309, %v283, 0
        %v317 = vsel %vm309, %v284, 0
        %v320 = vsel %vm309, %v285, 0
        %v323 = vsel %vm309, %v286, 0
        %v326 = vsel %vm309, %v287, 0
        %v329 = vsel %vm309, %v288, 0
        %v332 = vsel %vm309, %v289, 0
        %334 = vmatprep.subr.bf16.mxu0 0
        %335 = vmatpush1.bf16.msra.mxu0 0
        %336 = vmatprep.subr.bf16.mxu0 0
        %337 = vmatpush1.bf16.msra.mxu0 0
        %338 = vmatprep.subr.bf16.mxu0 0
        %339 = vmatpush1.bf16.msra.mxu0 0
        %340 = vmatprep.subr.bf16.mxu0 0
        %341 = vmatpush1.bf16.msra.mxu0 0
        %342 = vmatprep.subr.bf16.mxu0 0
        %343 = vmatpush1.bf16.msra.mxu0 %v301
        %344 = vmatprep.subr.bf16.mxu0 0
        %345 = vmatpush1.bf16.msra.mxu0 %v300
        %346 = vmatprep.subr.bf16.mxu0 0
        %347 = vmatpush1.bf16.msra.mxu0 %v299
        %348 = vmatprep.subr.bf16.mxu0 0
        %349 = vmatpush1.bf16.msra.mxu0 %v298
        %350 = vmatprep.subr.bf16.mxu0 0
        %351 = vmatpush2.bf16.msra.mxu0 0
        %352 = vmatprep.subr.bf16.mxu0 0
        %353 = vmatpush2.bf16.msra.mxu0 0
        %354 = vmatprep.subr.bf16.mxu0 0
        %355 = vmatpush2.bf16.msra.mxu0 0
        %356 = vmatprep.subr.bf16.mxu0 0
        %357 = vmatpush2.bf16.msra.mxu0 0
        %358 = vmatprep.subr.bf16.mxu0 0
        %359 = vmatpush2.bf16.msra.mxu0 0
        %360 = vmatprep.subr.bf16.mxu0 0
        %361 = vmatpush2.bf16.msra.mxu0 0
        %362 = vmatprep.subr.bf16.mxu0 0
        %363 = vmatpush2.bf16.msra.mxu0 0
        %364 = vmatprep.subr.bf16.mxu0 0
        %365 = vmatpush2.bf16.msra.mxu0 0
        %366 = vmatprep.mubr.bf16.mxu0 0
        %367 = vmatmul.mubr.bf16.gmra.mxu0 %v311
        %v368 = vpop.f32.mrf.mxu0
        %v369 = vadd.f32 %v307, %v368
        %v370 = vpop.f32.mrf.mxu0
        %v371 = vpop.f32.mrf.mxu0
        %v372 = vadd.f32 %v307, %v371
        %v373 = vpop.f32.mrf.mxu0
        %374 = vmatprep.mubr.bf16.mxu0 0
        %375 = vmatmul.mubr.bf16.gmra.mxu0 %v314
        %v376 = vpop.f32.mrf.mxu0
        %v377 = vadd.f32 %v307, %v376
        %v378 = vpop.f32.mrf.mxu0
        %v379 = vpop.f32.mrf.mxu0
        %v380 = vadd.f32 %v307, %v379
        %v381 = vpop.f32.mrf.mxu0
        %382 = vmatprep.mubr.bf16.mxu0 0
        %383 = vmatmul.mubr.bf16.gmra.mxu0 %v317
        %v384 = vpop.f32.mrf.mxu0
        %v385 = vadd.f32 %v307, %v384
        %v386 = vpop.f32.mrf.mxu0
        %v387 = vpop.f32.mrf.mxu0
        %v388 = vadd.f32 %v307, %v387
        %v389 = vpop.f32.mrf.mxu0
        %390 = vmatprep.mubr.bf16.mxu0 0
        %391 = vmatmul.mubr.bf16.gmra.mxu0 %v320
        %v392 = vpop.f32.mrf.mxu0
        %v393 = vadd.f32 %v307, %v392
        %v394 = vpop.f32.mrf.mxu0
        %v395 = vpop.f32.mrf.mxu0
        %v396 = vadd.f32 %v307, %v395
        %v397 = vpop.f32.mrf.mxu0
        %398 = vmatprep.mubr.bf16.mxu0 0
        %399 = vmatmul.mubr.bf16.gmra.mxu0 %v323
        %v400 = vpop.f32.mrf.mxu0
        %v401 = vadd.f32 %v307, %v400
        %v402 = vpop.f32.mrf.mxu0
        %v403 = vpop.f32.mrf.mxu0
        %v404 = vadd.f32 %v307, %v403
        %v405 = vpop.f32.mrf.mxu0
        %406 = vmatprep.mubr.bf16.mxu0 0
        %407 = vmatmul.mubr.bf16.gmra.mxu0 %v326
        %v408 = vpop.f32.mrf.mxu0
        %v409 = vadd.f32 %v307, %v408
        %v410 = vpop.f32.mrf.mxu0
        %v411 = vpop.f32.mrf.mxu0
        %v412 = vadd.f32 %v307, %v411
        %v413 = vpop.f32.mrf.mxu0
        %414 = vmatprep.mubr.bf16.mxu0 0
        %415 = vmatmul.mubr.bf16.gmra.mxu0 %v329
        %v416 = vpop.f32.mrf.mxu0
        %v417 = vadd.f32 %v307, %v416
        %v418 = vpop.f32.mrf.mxu0
        %v419 = vpop.f32.mrf.mxu0
        %v420 = vadd.f32 %v307, %v419
        %v421 = vpop.f32.mrf.mxu0
        %422 = vmatprep.mubr.bf16.mxu0 0
        %423 = vmatmul.mubr.bf16.gmra.mxu0 %v332
        %v424 = vpop.f32.mrf.mxu0
        %v425 = vadd.f32 %v307, %v424
        %v426 = vpop.f32.mrf.mxu0
        %v427 = vpop.f32.mrf.mxu0
        %v428 = vadd.f32 %v307, %v427
        %v429 = vpop.f32.mrf.mxu0
        %430 = vdwg.mxu0
        %v431 = vmax.f32 %v369, 0.0
        %v432 = vmax.f32 %v372, 0.0
        %v433 = vmax.f32 %v377, 0.0
        %v434 = vmax.f32 %v380, 0.0
        %v435 = vmax.f32 %v385, 0.0
        %v436 = vmax.f32 %v388, 0.0
        %v437 = vmax.f32 %v393, 0.0
        %v438 = vmax.f32 %v396, 0.0
        %v439 = vmax.f32 %v401, 0.0
        %v440 = vmax.f32 %v404, 0.0
        %v441 = vmax.f32 %v409, 0.0
        %v442 = vmax.f32 %v412, 0.0
        %v443 = vmax.f32 %v417, 0.0
        %v444 = vmax.f32 %v420, 0.0
        %v445 = vmax.f32 %v425, 0.0
        %v446 = vmax.f32 %v428, 0.0
        %v447 = vpack.c.bf16 %v432, %v431
        %v448 = vpack.c.bf16 %v434, %v433
        %v449 = vpack.c.bf16 %v436, %v435
        %v450 = vpack.c.bf16 %v438, %v437
        %v451 = vpack.c.bf16 %v440, %v439
        %v452 = vpack.c.bf16 %v442, %v441
        %v453 = vpack.c.bf16 %v444, %v443
        %v454 = vpack.c.bf16 %v446, %v445
        %v455 = vld [vmem:[%s3] sm:$0xff]
        %v456 = vld [vmem:[%s3 + $0x8] sm:$0xff]
        %v457 = vld [vmem:[%s3 + $0x10] sm:$0xff]
        %v458 = vld [vmem:[%s3 + $0x18] sm:$0xff]
        %v459 = vld [vmem:[%s3 + $0x20] sm:$0xff]
        %v460 = vld [vmem:[%s3 + $0x28] sm:$0xff]
        %v461 = vld [vmem:[%s3 + $0x30] sm:$0xff]
        %v462 = vld [vmem:[%s3 + $0x38] sm:$0xff]
        %v463 = vpack.c.bf16 %v457, %v455
        %v464 = vpack.c.bf16 %v458, %v456
        %v465 = vpack.c.bf16 %v461, %v459
        %v466 = vpack.c.bf16 %v462, %v460
        %v467 = vld [vmem:[%s4] sm:$0x3]
        %v469 = vlaneseq
        %v470 = vshrl.u32 %v469, 7
        %v471 = vsub.s32 0, %v470
        %v472 = vrot.slane %v467, %v471
        %v473 = vlaneseq
        %v474 = vshrl.u32 %v473, 7
        %v475 = vsub.s32 1, %v474
        %v476 = vrot.slane %v467, %v475
        %vm479 = vcmask 261120
        %v481 = vsel %vm479, %v447, 0
        %v484 = vsel %vm479, %v448, 0
        %v487 = vsel %vm479, %v449, 0
        %v490 = vsel %vm479, %v450, 0
        %v493 = vsel %vm479, %v451, 0
        %v496 = vsel %vm479, %v452, 0
        %v499 = vsel %vm479, %v453, 0
        %v502 = vsel %vm479, %v454, 0
        %504 = vmatprep.subr.bf16.mxu0 0
        %505 = vmatpush1.bf16.msra.mxu0 0
        %506 = vmatprep.subr.bf16.mxu0 0
        %507 = vmatpush1.bf16.msra.mxu0 0
        %508 = vmatprep.subr.bf16.mxu0 0
        %509 = vmatpush1.bf16.msra.mxu0 0
        %510 = vmatprep.subr.bf16.mxu0 0
        %511 = vmatpush1.bf16.msra.mxu0 0
        %512 = vmatprep.subr.bf16.mxu0 0
        %513 = vmatpush1.bf16.msra.mxu0 0
        %514 = vmatprep.subr.bf16.mxu0 0
        %515 = vmatpush1.bf16.msra.mxu0 0
        %516 = vmatprep.subr.bf16.mxu0 %v466
        %517 = vmatpush1.bf16.msra.mxu0 %v465
        %518 = vmatprep.subr.bf16.mxu0 %v464
        %519 = vmatpush1.bf16.msra.mxu0 %v463
        %520 = vmatprep.subr.bf16.mxu0 0
        %521 = vmatpush2.bf16.msra.mxu0 0
        %522 = vmatprep.subr.bf16.mxu0 0
        %523 = vmatpush2.bf16.msra.mxu0 0
        %524 = vmatprep.subr.bf16.mxu0 0
        %525 = vmatpush2.bf16.msra.mxu0 0
        %526 = vmatprep.subr.bf16.mxu0 0
        %527 = vmatpush2.bf16.msra.mxu0 0
        %528 = vmatprep.subr.bf16.mxu0 0
        %529 = vmatpush2.bf16.msra.mxu0 0
        %530 = vmatprep.subr.bf16.mxu0 0
        %531 = vmatpush2.bf16.msra.mxu0 0
        %532 = vmatprep.subr.bf16.mxu0 0
        %533 = vmatpush2.bf16.msra.mxu0 0
        %534 = vmatprep.subr.bf16.mxu0 0
        %535 = vmatpush2.bf16.msra.mxu0 0
        %536 = vmatprep.mubr.bf16.mxu0 0
        %537 = vmatmul.mubr.bf16.gmra.mxu0 %v481
        %v538 = vpop.f32.mrf.mxu0
        %v539 = vadd.f32 %v472, %v538
        %v540 = vpop.f32.mrf.mxu0
        %v541 = vadd.f32 %v476, %v540
        %v542 = vpop.f32.mrf.mxu0
        %v543 = vadd.f32 %v472, %v542
        %v544 = vpop.f32.mrf.mxu0
        %v545 = vadd.f32 %v476, %v544
        %546 = vmatprep.mubr.bf16.mxu0 0
        %547 = vmatmul.mubr.bf16.gmra.mxu0 %v484
        %v548 = vpop.f32.mrf.mxu0
        %v549 = vadd.f32 %v472, %v548
        %v550 = vpop.f32.mrf.mxu0
        %v551 = vadd.f32 %v476, %v550
        %v552 = vpop.f32.mrf.mxu0
        %v553 = vadd.f32 %v472, %v552
        %v554 = vpop.f32.mrf.mxu0
        %v555 = vadd.f32 %v476, %v554
        %556 = vmatprep.mubr.bf16.mxu0 0
        %557 = vmatmul.mubr.bf16.gmra.mxu0 %v487
        %v558 = vpop.f32.mrf.mxu0
        %v559 = vadd.f32 %v472, %v558
        %v560 = vpop.f32.mrf.mxu0
        %v561 = vadd.f32 %v476, %v560
        %v562 = vpop.f32.mrf.mxu0
        %v563 = vadd.f32 %v472, %v562
        %v564 = vpop.f32.mrf.mxu0
        %v565 = vadd.f32 %v476, %v564
        %566 = vmatprep.mubr.bf16.mxu0 0
        %567 = vmatmul.mubr.bf16.gmra.mxu0 %v490
        %v568 = vpop.f32.mrf.mxu0
        %v569 = vadd.f32 %v472, %v568
        %v570 = vpop.f32.mrf.mxu0
        %v571 = vadd.f32 %v476, %v570
        %v572 = vpop.f32.mrf.mxu0
        %v573 = vadd.f32 %v472, %v572
        %v574 = vpop.f32.mrf.mxu0
        %v575 = vadd.f32 %v476, %v574
        %576 = vmatprep.mubr.bf16.mxu0 0
        %577 = vmatmul.mubr.bf16.gmra.mxu0 %v493
        %v578 = vpop.f32.mrf.mxu0
        %v579 = vadd.f32 %v472, %v578
        %v580 = vpop.f32.mrf.mxu0
        %v581 = vadd.f32 %v476, %v580
        %v582 = vpop.f32.mrf.mxu0
        %v583 = vadd.f32 %v472, %v582
        %v584 = vpop.f32.mrf.mxu0
        %v585 = vadd.f32 %v476, %v584
        %586 = vmatprep.mubr.bf16.mxu0 0
        %587 = vmatmul.mubr.bf16.gmra.mxu0 %v496
        %v588 = vpop.f32.mrf.mxu0
        %v589 = vadd.f32 %v472, %v588
        %v590 = vpop.f32.mrf.mxu0
        %v591 = vadd.f32 %v476, %v590
        %v592 = vpop.f32.mrf.mxu0
        %v593 = vadd.f32 %v472, %v592
        %v594 = vpop.f32.mrf.mxu0
        %v595 = vadd.f32 %v476, %v594
        %596 = vmatprep.mubr.bf16.mxu0 0
        %597 = vmatmul.mubr.bf16.gmra.mxu0 %v499
        %v598 = vpop.f32.mrf.mxu0
        %v599 = vadd.f32 %v472, %v598
        %v600 = vpop.f32.mrf.mxu0
        %v601 = vadd.f32 %v476, %v600
        %v602 = vpop.f32.mrf.mxu0
        %v603 = vadd.f32 %v472, %v602
        %v604 = vpop.f32.mrf.mxu0
        %v605 = vadd.f32 %v476, %v604
        %606 = vmatprep.mubr.bf16.mxu0 0
        %607 = vmatmul.mubr.bf16.gmra.mxu0 %v502
        %v608 = vpop.f32.mrf.mxu0
        %v609 = vadd.f32 %v472, %v608
        %v610 = vpop.f32.mrf.mxu0
        %v611 = vadd.f32 %v476, %v610
        %v612 = vpop.f32.mrf.mxu0
        %v613 = vadd.f32 %v472, %v612
        %v614 = vpop.f32.mrf.mxu0
        %v615 = vadd.f32 %v476, %v614
        %616 = vdwg.mxu0
        %617 = vst [vmem:[%s249] sm:$0xff] %v539
        %618 = vst [vmem:[%s249 + $0x8] sm:$0xff] %v541
        %619 = vst [vmem:[%s249 + $0x10] sm:$0xff] %v543
        %620 = vst [vmem:[%s249 + $0x18] sm:$0xff] %v545
        %621 = vst [vmem:[%s249 + $0x20] sm:$0xff] %v549
        %622 = vst [vmem:[%s249 + $0x28] sm:$0xff] %v551
        %623 = vst [vmem:[%s249 + $0x30] sm:$0xff] %v553
        %624 = vst [vmem:[%s249 + $0x38] sm:$0xff] %v555
        %625 = vst [vmem:[%s249 + $0x40] sm:$0xff] %v559
        %626 = vst [vmem:[%s249 + $0x48] sm:$0xff] %v561
        %627 = vst [vmem:[%s249 + $0x50] sm:$0xff] %v563
        %628 = vst [vmem:[%s249 + $0x58] sm:$0xff] %v565
        %629 = vst [vmem:[%s249 + $0x60] sm:$0xff] %v569
        %630 = vst [vmem:[%s249 + $0x68] sm:$0xff] %v571
        %631 = vst [vmem:[%s249 + $0x70] sm:$0xff] %v573
        %632 = vst [vmem:[%s249 + $0x78] sm:$0xff] %v575
        %633 = vst [vmem:[%s249 + $0x80] sm:$0xff] %v579
        %634 = vst [vmem:[%s249 + $0x88] sm:$0xff] %v581
        %635 = vst [vmem:[%s249 + $0x90] sm:$0xff] %v583
        %636 = vst [vmem:[%s249 + $0x98] sm:$0xff] %v585
        %637 = vst [vmem:[%s249 + $0xa0] sm:$0xff] %v589
        %638 = vst [vmem:[%s249 + $0xa8] sm:$0xff] %v591
        %639 = vst [vmem:[%s249 + $0xb0] sm:$0xff] %v593
        %640 = vst [vmem:[%s249 + $0xb8] sm:$0xff] %v595
        %641 = vst [vmem:[%s249 + $0xc0] sm:$0xff] %v599
        %642 = vst [vmem:[%s249 + $0xc8] sm:$0xff] %v601
        %643 = vst [vmem:[%s249 + $0xd0] sm:$0xff] %v603
        %644 = vst [vmem:[%s249 + $0xd8] sm:$0xff] %v605
        %645 = vst [vmem:[%s249 + $0xe0] sm:$0xff] %v609
        %646 = vst [vmem:[%s249 + $0xe8] sm:$0xff] %v611
        %647 = vst [vmem:[%s249 + $0xf0] sm:$0xff] %v613
        %648 = vst [vmem:[%s249 + $0xf8] sm:$0xff] %v615
        %v649 = vlaneseq
        %v650 = vand.u32 %v649, 127
        %v651 = vadd.s32 %v650, 128
        %vm652 = vcmp.lt.s32.totalorder %v650, 65
        %vm653 = vcmp.lt.s32.totalorder %v651, 65
        %vm654 = vcmp.ge.s32.totalorder %v650, 128
        %vm655 = vcmp.ge.s32.totalorder %v651, 128
        %vm656 = vcmp.lt.s32.totalorder %v650, 192
        %vm657 = vcmp.lt.s32.totalorder %v651, 192
        %vm658 = vmand %vm654, %vm656
        %vm659 = vmand %vm655, %vm657
        %v660 = vsel %vm652, 1, 0
        %v661 = vsel %vm653, 1, 0
        %vm662 = vcmp.eq.s32.totalorder %v660, 1
        %vm663 = vcmp.eq.s32.totalorder %v661, 1
        %v664 = vsel %vm662, %v539, -1e+30
        %v665 = vsel %vm663, %v541, -1e+30
        %v666 = vsel %vm662, %v543, -1e+30
        %v667 = vsel %vm663, %v545, -1e+30
        %v668 = vsel %vm662, %v549, -1e+30
        %v669 = vsel %vm663, %v551, -1e+30
        %v670 = vsel %vm662, %v553, -1e+30
        %v671 = vsel %vm663, %v555, -1e+30
        %v672 = vsel %vm662, %v559, -1e+30
        %v673 = vsel %vm663, %v561, -1e+30
        %v674 = vsel %vm662, %v563, -1e+30
        %v675 = vsel %vm663, %v565, -1e+30
        %v676 = vsel %vm662, %v569, -1e+30
        %v677 = vsel %vm663, %v571, -1e+30
        %v678 = vsel %vm662, %v573, -1e+30
        %v679 = vsel %vm663, %v575, -1e+30
        %v680 = vsel %vm662, %v579, -1e+30
        %v681 = vsel %vm663, %v581, -1e+30
        %v682 = vsel %vm662, %v583, -1e+30
        %v683 = vsel %vm663, %v585, -1e+30
        %v684 = vsel %vm662, %v589, -1e+30
        %v685 = vsel %vm663, %v591, -1e+30
        %v686 = vsel %vm662, %v593, -1e+30
        %v687 = vsel %vm663, %v595, -1e+30
        %v688 = vsel %vm662, %v599, -1e+30
        %v689 = vsel %vm663, %v601, -1e+30
        %v690 = vsel %vm662, %v603, -1e+30
        %v691 = vsel %vm663, %v605, -1e+30
        %v692 = vsel %vm662, %v609, -1e+30
        %v693 = vsel %vm663, %v611, -1e+30
        %v694 = vsel %vm662, %v613, -1e+30
        %v695 = vsel %vm663, %v615, -1e+30
        %v696 = vmax.f32 %v664, %v665
        %697 = vmax.xlane.f32.xlu0 %v696
        %v698 = vpop.xlane.xlu0 %697
        %v699 = vmax.f32 %v666, %v667
        %700 = vmax.xlane.f32.xlu0 %v699
        %v701 = vpop.xlane.xlu0 %700
        %v702 = vmax.f32 %v668, %v669
        %703 = vmax.xlane.f32.xlu0 %v702
        %v704 = vpop.xlane.xlu0 %703
        %v705 = vmax.f32 %v670, %v671
        %706 = vmax.xlane.f32.xlu0 %v705
        %v707 = vpop.xlane.xlu0 %706
        %v708 = vmax.f32 %v672, %v673
        %709 = vmax.xlane.f32.xlu0 %v708
        %v710 = vpop.xlane.xlu0 %709
        %v711 = vmax.f32 %v674, %v675
        %712 = vmax.xlane.f32.xlu0 %v711
        %v713 = vpop.xlane.xlu0 %712
        %v714 = vmax.f32 %v676, %v677
        %715 = vmax.xlane.f32.xlu0 %v714
        %v716 = vpop.xlane.xlu0 %715
        %v717 = vmax.f32 %v678, %v679
        %718 = vmax.xlane.f32.xlu0 %v717
        %v719 = vpop.xlane.xlu0 %718
        %v720 = vmax.f32 %v680, %v681
        %721 = vmax.xlane.f32.xlu0 %v720
        %v722 = vpop.xlane.xlu0 %721
        %v723 = vmax.f32 %v682, %v683
        %724 = vmax.xlane.f32.xlu0 %v723
        %v725 = vpop.xlane.xlu0 %724
        %v726 = vmax.f32 %v684, %v685
        %727 = vmax.xlane.f32.xlu0 %v726
        %v728 = vpop.xlane.xlu0 %727
        %v729 = vmax.f32 %v686, %v687
        %730 = vmax.xlane.f32.xlu0 %v729
        %v731 = vpop.xlane.xlu0 %730
        %v732 = vmax.f32 %v688, %v689
        %733 = vmax.xlane.f32.xlu0 %v732
        %v734 = vpop.xlane.xlu0 %733
        %v735 = vmax.f32 %v690, %v691
        %736 = vmax.xlane.f32.xlu0 %v735
        %v737 = vpop.xlane.xlu0 %736
        %v738 = vmax.f32 %v692, %v693
        %739 = vmax.xlane.f32.xlu0 %v738
        %v740 = vpop.xlane.xlu0 %739
        %v741 = vmax.f32 %v694, %v695
        %742 = vmax.xlane.f32.xlu0 %v741
        %v743 = vpop.xlane.xlu0 %742
        %v744 = vsub.f32 %v539, %v698
        %v745 = vsub.f32 %v541, %v698
        %v746 = vsub.f32 %v543, %v701
        %v747 = vsub.f32 %v545, %v701
        %v748 = vsub.f32 %v549, %v704
        %v749 = vsub.f32 %v551, %v704
        %v750 = vsub.f32 %v553, %v707
        %v751 = vsub.f32 %v555, %v707
        %v752 = vsub.f32 %v559, %v710
        %v753 = vsub.f32 %v561, %v710
        %v754 = vsub.f32 %v563, %v713
        %v755 = vsub.f32 %v565, %v713
        %v756 = vsub.f32 %v569, %v716
        %v757 = vsub.f32 %v571, %v716
        %v758 = vsub.f32 %v573, %v719
        %v759 = vsub.f32 %v575, %v719
        %v760 = vsub.f32 %v579, %v722
        %v761 = vsub.f32 %v581, %v722
        %v762 = vsub.f32 %v583, %v725
        %v763 = vsub.f32 %v585, %v725
        %v764 = vsub.f32 %v589, %v728
        %v765 = vsub.f32 %v591, %v728
        %v766 = vsub.f32 %v593, %v731
        %v767 = vsub.f32 %v595, %v731
        %v768 = vsub.f32 %v599, %v734
        %v769 = vsub.f32 %v601, %v734
        %v770 = vsub.f32 %v603, %v737
        %v771 = vsub.f32 %v605, %v737
        %v772 = vsub.f32 %v609, %v740
        %v773 = vsub.f32 %v611, %v740
        %v774 = vsub.f32 %v613, %v743
        %v775 = vsub.f32 %v615, %v743
        %v776 = vmul.f32 %v744, 1.442695
        %v777 = vpow.pop %v776
        %v778 = vmul.f32 %v745, 1.442695
        %v779 = vpow.pop %v778
        %v780 = vmul.f32 %v746, 1.442695
        %v781 = vpow.pop %v780
        %v782 = vmul.f32 %v747, 1.442695
        %v783 = vpow.pop %v782
        %v784 = vmul.f32 %v748, 1.442695
        %v785 = vpow.pop %v784
        %v786 = vmul.f32 %v749, 1.442695
        %v787 = vpow.pop %v786
        %v788 = vmul.f32 %v750, 1.442695
        %v789 = vpow.pop %v788
        %v790 = vmul.f32 %v751, 1.442695
        %v791 = vpow.pop %v790
        %v792 = vmul.f32 %v752, 1.442695
        %v793 = vpow.pop %v792
        %v794 = vmul.f32 %v753, 1.442695
        %v795 = vpow.pop %v794
        %v796 = vmul.f32 %v754, 1.442695
        %v797 = vpow.pop %v796
        %v798 = vmul.f32 %v755, 1.442695
        %v799 = vpow.pop %v798
        %v800 = vmul.f32 %v756, 1.442695
        %v801 = vpow.pop %v800
        %v802 = vmul.f32 %v757, 1.442695
        %v803 = vpow.pop %v802
        %v804 = vmul.f32 %v758, 1.442695
        %v805 = vpow.pop %v804
        %v806 = vmul.f32 %v759, 1.442695
        %v807 = vpow.pop %v806
        %v808 = vmul.f32 %v760, 1.442695
        %v809 = vpow.pop %v808
        %v810 = vmul.f32 %v761, 1.442695
        %v811 = vpow.pop %v810
        %v812 = vmul.f32 %v762, 1.442695
        %v813 = vpow.pop %v812
        %v814 = vmul.f32 %v763, 1.442695
        %v815 = vpow.pop %v814
        %v816 = vmul.f32 %v764, 1.442695
        %v817 = vpow.pop %v816
        %v818 = vmul.f32 %v765, 1.442695
        %v819 = vpow.pop %v818
        %v820 = vmul.f32 %v766, 1.442695
        %v821 = vpow.pop %v820
        %v822 = vmul.f32 %v767, 1.442695
        %v823 = vpow.pop %v822
        %v824 = vmul.f32 %v768, 1.442695
        %v825 = vpow.pop %v824
        %v826 = vmul.f32 %v769, 1.442695
        %v827 = vpow.pop %v826
        %v828 = vmul.f32 %v770, 1.442695
        %v829 = vpow.pop %v828
        %v830 = vmul.f32 %v771, 1.442695
        %v831 = vpow.pop %v830
        %v832 = vmul.f32 %v772, 1.442695
        %v833 = vpow.pop %v832
        %v834 = vmul.f32 %v773, 1.442695
        %v835 = vpow.pop %v834
        %v836 = vmul.f32 %v774, 1.442695
        %v837 = vpow.pop %v836
        %v838 = vmul.f32 %v775, 1.442695
        %v839 = vpow.pop %v838
        %v840 = vsel %vm662, %v777, 0.0
        %v841 = vsel %vm663, %v779, 0.0
        %v842 = vsel %vm662, %v781, 0.0
        %v843 = vsel %vm663, %v783, 0.0
        %v844 = vsel %vm662, %v785, 0.0
        %v845 = vsel %vm663, %v787, 0.0
        %v846 = vsel %vm662, %v789, 0.0
        %v847 = vsel %vm663, %v791, 0.0
        %v848 = vsel %vm662, %v793, 0.0
        %v849 = vsel %vm663, %v795, 0.0
        %v850 = vsel %vm662, %v797, 0.0
        %v851 = vsel %vm663, %v799, 0.0
        %v852 = vsel %vm662, %v801, 0.0
        %v853 = vsel %vm663, %v803, 0.0
        %v854 = vsel %vm662, %v805, 0.0
        %v855 = vsel %vm663, %v807, 0.0
        %v856 = vsel %vm662, %v809, 0.0
        %v857 = vsel %vm663, %v811, 0.0
        %v858 = vsel %vm662, %v813, 0.0
        %v859 = vsel %vm663, %v815, 0.0
        %v860 = vsel %vm662, %v817, 0.0
        %v861 = vsel %vm663, %v819, 0.0
        %v862 = vsel %vm662, %v821, 0.0
        %v863 = vsel %vm663, %v823, 0.0
        %v864 = vsel %vm662, %v825, 0.0
        %v865 = vsel %vm663, %v827, 0.0
        %v866 = vsel %vm662, %v829, 0.0
        %v867 = vsel %vm663, %v831, 0.0
        %v868 = vsel %vm662, %v833, 0.0
        %v869 = vsel %vm663, %v835, 0.0
        %v870 = vsel %vm662, %v837, 0.0
        %v871 = vsel %vm663, %v839, 0.0
        %v872 = vadd.f32 %v840, %v841
        %873 = vadd.xlane.f32.xlu0 %v872
        %v874 = vpop.xlane.xlu0 %873
        %v875 = vadd.f32 %v842, %v843
        %876 = vadd.xlane.f32.xlu0 %v875
        %v877 = vpop.xlane.xlu0 %876
        %v878 = vadd.f32 %v844, %v845
        %879 = vadd.xlane.f32.xlu0 %v878
        %v880 = vpop.xlane.xlu0 %879
        %v881 = vadd.f32 %v846, %v847
        %882 = vadd.xlane.f32.xlu0 %v881
        %v883 = vpop.xlane.xlu0 %882
        %v884 = vadd.f32 %v848, %v849
        %885 = vadd.xlane.f32.xlu0 %v884
        %v886 = vpop.xlane.xlu0 %885
        %v887 = vadd.f32 %v850, %v851
        %888 = vadd.xlane.f32.xlu0 %v887
        %v889 = vpop.xlane.xlu0 %888
        %v890 = vadd.f32 %v852, %v853
        %891 = vadd.xlane.f32.xlu0 %v890
        %v892 = vpop.xlane.xlu0 %891
        %v893 = vadd.f32 %v854, %v855
        %894 = vadd.xlane.f32.xlu0 %v893
        %v895 = vpop.xlane.xlu0 %894
        %v896 = vadd.f32 %v856, %v857
        %897 = vadd.xlane.f32.xlu0 %v896
        %v898 = vpop.xlane.xlu0 %897
        %v899 = vadd.f32 %v858, %v859
        %900 = vadd.xlane.f32.xlu0 %v899
        %v901 = vpop.xlane.xlu0 %900
        %v902 = vadd.f32 %v860, %v861
        %903 = vadd.xlane.f32.xlu0 %v902
        %v904 = vpop.xlane.xlu0 %903
        %v905 = vadd.f32 %v862, %v863
        %906 = vadd.xlane.f32.xlu0 %v905
        %v907 = vpop.xlane.xlu0 %906
        %v908 = vadd.f32 %v864, %v865
        %909 = vadd.xlane.f32.xlu0 %v908
        %v910 = vpop.xlane.xlu0 %909
        %v911 = vadd.f32 %v866, %v867
        %912 = vadd.xlane.f32.xlu0 %v911
        %v913 = vpop.xlane.xlu0 %912
        %v914 = vadd.f32 %v868, %v869
        %915 = vadd.xlane.f32.xlu0 %v914
        %v916 = vpop.xlane.xlu0 %915
        %v917 = vadd.f32 %v870, %v871
        %918 = vadd.xlane.f32.xlu0 %v917
        %v919 = vpop.xlane.xlu0 %918
        %v920 = vrcp.pop %v874
        %v921 = vrcp.pop %v877
        %v922 = vrcp.pop %v880
        %v923 = vrcp.pop %v883
        %v924 = vrcp.pop %v886
        %v925 = vrcp.pop %v889
        %v926 = vrcp.pop %v892
        %v927 = vrcp.pop %v895
        %v928 = vrcp.pop %v898
        %v929 = vrcp.pop %v901
        %v930 = vrcp.pop %v904
        %v931 = vrcp.pop %v907
        %v932 = vrcp.pop %v910
        %v933 = vrcp.pop %v913
        %v934 = vrcp.pop %v916
        %v935 = vrcp.pop %v919
        %v936 = vmul.f32 %v840, %v920
        %v937 = vmul.f32 %v841, %v920
        %v938 = vmul.f32 %v842, %v921
        %v939 = vmul.f32 %v843, %v921
        %v940 = vmul.f32 %v844, %v922
        %v941 = vmul.f32 %v845, %v922
        %v942 = vmul.f32 %v846, %v923
        %v943 = vmul.f32 %v847, %v923
        %v944 = vmul.f32 %v848, %v924
        %v945 = vmul.f32 %v849, %v924
        %v946 = vmul.f32 %v850, %v925
        %v947 = vmul.f32 %v851, %v925
        %v948 = vmul.f32 %v852, %v926
        %v949 = vmul.f32 %v853, %v926
        %v950 = vmul.f32 %v854, %v927
        %v951 = vmul.f32 %v855, %v927
        %v952 = vmul.f32 %v856, %v928
        %v953 = vmul.f32 %v857, %v928
        %v954 = vmul.f32 %v858, %v929
        %v955 = vmul.f32 %v859, %v929
        %v956 = vmul.f32 %v860, %v930
        %v957 = vmul.f32 %v861, %v930
        %v958 = vmul.f32 %v862, %v931
        %v959 = vmul.f32 %v863, %v931
        %v960 = vmul.f32 %v864, %v932
        %v961 = vmul.f32 %v865, %v932
        %v962 = vmul.f32 %v866, %v933
        %v963 = vmul.f32 %v867, %v933
        %v964 = vmul.f32 %v868, %v934
        %v965 = vmul.f32 %v869, %v934
        %v966 = vmul.f32 %v870, %v935
        %v967 = vmul.f32 %v871, %v935
        %v968 = vsel %vm658, 1, 0
        %v969 = vsel %vm659, 1, 0
        %vm970 = vcmp.eq.s32.totalorder %v968, 1
        %vm971 = vcmp.eq.s32.totalorder %v969, 1
        %v972 = vsel %vm970, %v539, 0.0
        %v973 = vsel %vm971, %v541, 0.0
        %v974 = vsel %vm970, %v543, 0.0
        %v975 = vsel %vm971, %v545, 0.0
        %v976 = vsel %vm970, %v549, 0.0
        %v977 = vsel %vm971, %v551, 0.0
        %v978 = vsel %vm970, %v553, 0.0
        %v979 = vsel %vm971, %v555, 0.0
        %v980 = vsel %vm970, %v559, 0.0
        %v981 = vsel %vm971, %v561, 0.0
        %v982 = vsel %vm970, %v563, 0.0
        %v983 = vsel %vm971, %v565, 0.0
        %v984 = vsel %vm970, %v569, 0.0
        %v985 = vsel %vm971, %v571, 0.0
        %v986 = vsel %vm970, %v573, 0.0
        %v987 = vsel %vm971, %v575, 0.0
        %v988 = vsel %vm970, %v579, 0.0
        %v989 = vsel %vm971, %v581, 0.0
        %v990 = vsel %vm970, %v583, 0.0
        %v991 = vsel %vm971, %v585, 0.0
        %v992 = vsel %vm970, %v589, 0.0
        %v993 = vsel %vm971, %v591, 0.0
        %v994 = vsel %vm970, %v593, 0.0
        %v995 = vsel %vm971, %v595, 0.0
        %v996 = vsel %vm970, %v599, 0.0
        %v997 = vsel %vm971, %v601, 0.0
        %v998 = vsel %vm970, %v603, 0.0
        %v999 = vsel %vm971, %v605, 0.0
        %v1000 = vsel %vm970, %v609, 0.0
        %v1001 = vsel %vm971, %v611, 0.0
        %v1002 = vsel %vm970, %v613, 0.0
        %v1003 = vsel %vm971, %v615, 0.0
        %v1004 = vmul.f32 %v972, %v972
        %v1005 = vmul.f32 %v973, %v973
        %v1006 = vmul.f32 %v974, %v974
        %v1007 = vmul.f32 %v975, %v975
        %v1008 = vmul.f32 %v976, %v976
        %v1009 = vmul.f32 %v977, %v977
        %v1010 = vmul.f32 %v978, %v978
        %v1011 = vmul.f32 %v979, %v979
        %v1012 = vmul.f32 %v980, %v980
        %v1013 = vmul.f32 %v981, %v981
        %v1014 = vmul.f32 %v982, %v982
        %v1015 = vmul.f32 %v983, %v983
        %v1016 = vmul.f32 %v984, %v984
        %v1017 = vmul.f32 %v985, %v985
        %v1018 = vmul.f32 %v986, %v986
        %v1019 = vmul.f32 %v987, %v987
        %v1020 = vmul.f32 %v988, %v988
        %v1021 = vmul.f32 %v989, %v989
        %v1022 = vmul.f32 %v990, %v990
        %v1023 = vmul.f32 %v991, %v991
        %v1024 = vmul.f32 %v992, %v992
        %v1025 = vmul.f32 %v993, %v993
        %v1026 = vmul.f32 %v994, %v994
        %v1027 = vmul.f32 %v995, %v995
        %v1028 = vmul.f32 %v996, %v996
        %v1029 = vmul.f32 %v997, %v997
        %v1030 = vmul.f32 %v998, %v998
        %v1031 = vmul.f32 %v999, %v999
        %v1032 = vmul.f32 %v1000, %v1000
        %v1033 = vmul.f32 %v1001, %v1001
        %v1034 = vmul.f32 %v1002, %v1002
        %v1035 = vmul.f32 %v1003, %v1003
        %v1036 = vadd.f32 %v1004, %v1005
        %1037 = vadd.xlane.f32.xlu0 %v1036
        %v1038 = vpop.xlane.xlu0 %1037
        %v1039 = vadd.f32 %v1006, %v1007
        %1040 = vadd.xlane.f32.xlu0 %v1039
        %v1041 = vpop.xlane.xlu0 %1040
        %v1042 = vadd.f32 %v1008, %v1009
        %1043 = vadd.xlane.f32.xlu0 %v1042
        %v1044 = vpop.xlane.xlu0 %1043
        %v1045 = vadd.f32 %v1010, %v1011
        %1046 = vadd.xlane.f32.xlu0 %v1045
        %v1047 = vpop.xlane.xlu0 %1046
        %v1048 = vadd.f32 %v1012, %v1013
        %1049 = vadd.xlane.f32.xlu0 %v1048
        %v1050 = vpop.xlane.xlu0 %1049
        %v1051 = vadd.f32 %v1014, %v1015
        %1052 = vadd.xlane.f32.xlu0 %v1051
        %v1053 = vpop.xlane.xlu0 %1052
        %v1054 = vadd.f32 %v1016, %v1017
        %1055 = vadd.xlane.f32.xlu0 %v1054
        %v1056 = vpop.xlane.xlu0 %1055
        %v1057 = vadd.f32 %v1018, %v1019
        %1058 = vadd.xlane.f32.xlu0 %v1057
        %v1059 = vpop.xlane.xlu0 %1058
        %v1060 = vadd.f32 %v1020, %v1021
        %1061 = vadd.xlane.f32.xlu0 %v1060
        %v1062 = vpop.xlane.xlu0 %1061
        %v1063 = vadd.f32 %v1022, %v1023
        %1064 = vadd.xlane.f32.xlu0 %v1063
        %v1065 = vpop.xlane.xlu0 %1064
        %v1066 = vadd.f32 %v1024, %v1025
        %1067 = vadd.xlane.f32.xlu0 %v1066
        %v1068 = vpop.xlane.xlu0 %1067
        %v1069 = vadd.f32 %v1026, %v1027
        %1070 = vadd.xlane.f32.xlu0 %v1069
        %v1071 = vpop.xlane.xlu0 %1070
        %v1072 = vadd.f32 %v1028, %v1029
        %1073 = vadd.xlane.f32.xlu0 %v1072
        %v1074 = vpop.xlane.xlu0 %1073
        %v1075 = vadd.f32 %v1030, %v1031
        %1076 = vadd.xlane.f32.xlu0 %v1075
        %v1077 = vpop.xlane.xlu0 %1076
        %v1078 = vadd.f32 %v1032, %v1033
        %1079 = vadd.xlane.f32.xlu0 %v1078
        %v1080 = vpop.xlane.xlu0 %1079
        %v1081 = vadd.f32 %v1034, %v1035
        %1082 = vadd.xlane.f32.xlu0 %v1081
        %v1083 = vpop.xlane.xlu0 %1082
        %v1084 = vadd.f32 %v1038, 1e-12
        %v1085 = vadd.f32 %v1041, 1e-12
        %v1086 = vadd.f32 %v1044, 1e-12
        %v1087 = vadd.f32 %v1047, 1e-12
        %v1088 = vadd.f32 %v1050, 1e-12
        %v1089 = vadd.f32 %v1053, 1e-12
        %v1090 = vadd.f32 %v1056, 1e-12
        %v1091 = vadd.f32 %v1059, 1e-12
        %v1092 = vadd.f32 %v1062, 1e-12
        %v1093 = vadd.f32 %v1065, 1e-12
        %v1094 = vadd.f32 %v1068, 1e-12
        %v1095 = vadd.f32 %v1071, 1e-12
        %v1096 = vadd.f32 %v1074, 1e-12
        %v1097 = vadd.f32 %v1077, 1e-12
        %v1098 = vadd.f32 %v1080, 1e-12
        %v1099 = vadd.f32 %v1083, 1e-12
        %v1100 = vrsqrt.pop %v1084
        %v1101 = vrsqrt.pop %v1085
        %v1102 = vrsqrt.pop %v1086
        %v1103 = vrsqrt.pop %v1087
        %v1104 = vrsqrt.pop %v1088
        %v1105 = vrsqrt.pop %v1089
        %v1106 = vrsqrt.pop %v1090
        %v1107 = vrsqrt.pop %v1091
        %v1108 = vrsqrt.pop %v1092
        %v1109 = vrsqrt.pop %v1093
        %v1110 = vrsqrt.pop %v1094
        %v1111 = vrsqrt.pop %v1095
        %v1112 = vrsqrt.pop %v1096
        %v1113 = vrsqrt.pop %v1097
        %v1114 = vrsqrt.pop %v1098
        %v1115 = vrsqrt.pop %v1099
        %v1116 = vmul.f32 %v972, %v1100
        %v1117 = vmul.f32 %v973, %v1100
        %v1118 = vmul.f32 %v974, %v1101
        %v1119 = vmul.f32 %v975, %v1101
        %v1120 = vmul.f32 %v976, %v1102
        %v1121 = vmul.f32 %v977, %v1102
        %v1122 = vmul.f32 %v978, %v1103
        %v1123 = vmul.f32 %v979, %v1103
        %v1124 = vmul.f32 %v980, %v1104
        %v1125 = vmul.f32 %v981, %v1104
        %v1126 = vmul.f32 %v982, %v1105
        %v1127 = vmul.f32 %v983, %v1105
        %v1128 = vmul.f32 %v984, %v1106
        %v1129 = vmul.f32 %v985, %v1106
        %v1130 = vmul.f32 %v986, %v1107
        %v1131 = vmul.f32 %v987, %v1107
        %v1132 = vmul.f32 %v988, %v1108
        %v1133 = vmul.f32 %v989, %v1108
        %v1134 = vmul.f32 %v990, %v1109
        %v1135 = vmul.f32 %v991, %v1109
        %v1136 = vmul.f32 %v992, %v1110
        %v1137 = vmul.f32 %v993, %v1110
        %v1138 = vmul.f32 %v994, %v1111
        %v1139 = vmul.f32 %v995, %v1111
        %v1140 = vmul.f32 %v996, %v1112
        %v1141 = vmul.f32 %v997, %v1112
        %v1142 = vmul.f32 %v998, %v1113
        %v1143 = vmul.f32 %v999, %v1113
        %v1144 = vmul.f32 %v1000, %v1114
        %v1145 = vmul.f32 %v1001, %v1114
        %v1146 = vmul.f32 %v1002, %v1115
        %v1147 = vmul.f32 %v1003, %v1115
        %v1148 = vadd.f32 %v936, %v1116
        %v1149 = vadd.f32 %v937, %v1117
        %v1150 = vadd.f32 %v938, %v1118
        %v1151 = vadd.f32 %v939, %v1119
        %v1152 = vadd.f32 %v940, %v1120
        %v1153 = vadd.f32 %v941, %v1121
        %v1154 = vadd.f32 %v942, %v1122
        %v1155 = vadd.f32 %v943, %v1123
        %v1156 = vadd.f32 %v944, %v1124
        %v1157 = vadd.f32 %v945, %v1125
        %v1158 = vadd.f32 %v946, %v1126
        %v1159 = vadd.f32 %v947, %v1127
        %v1160 = vadd.f32 %v948, %v1128
        %v1161 = vadd.f32 %v949, %v1129
        %v1162 = vadd.f32 %v950, %v1130
        %v1163 = vadd.f32 %v951, %v1131
        %v1164 = vadd.f32 %v952, %v1132
        %v1165 = vadd.f32 %v953, %v1133
        %v1166 = vadd.f32 %v954, %v1134
        %v1167 = vadd.f32 %v955, %v1135
        %v1168 = vadd.f32 %v956, %v1136
        %v1169 = vadd.f32 %v957, %v1137
        %v1170 = vadd.f32 %v958, %v1138
        %v1171 = vadd.f32 %v959, %v1139
        %v1172 = vadd.f32 %v960, %v1140
        %v1173 = vadd.f32 %v961, %v1141
        %v1174 = vadd.f32 %v962, %v1142
        %v1175 = vadd.f32 %v963, %v1143
        %v1176 = vadd.f32 %v964, %v1144
        %v1177 = vadd.f32 %v965, %v1145
        %v1178 = vadd.f32 %v966, %v1146
        %v1179 = vadd.f32 %v967, %v1147
        %1180 = vst [vmem:[%s256] sm:$0xff] %v1148
        %1181 = vst [vmem:[%s256 + $0x8] sm:$0xff] %v1149
        %1182 = vst [vmem:[%s256 + $0x10] sm:$0xff] %v1150
        %1183 = vst [vmem:[%s256 + $0x18] sm:$0xff] %v1151
        %1184 = vst [vmem:[%s256 + $0x20] sm:$0xff] %v1152
        %1185 = vst [vmem:[%s256 + $0x28] sm:$0xff] %v1153
        %1186 = vst [vmem:[%s256 + $0x30] sm:$0xff] %v1154
        %1187 = vst [vmem:[%s256 + $0x38] sm:$0xff] %v1155
        %1188 = vst [vmem:[%s256 + $0x40] sm:$0xff] %v1156
        %1189 = vst [vmem:[%s256 + $0x48] sm:$0xff] %v1157
        %1190 = vst [vmem:[%s256 + $0x50] sm:$0xff] %v1158
        %1191 = vst [vmem:[%s256 + $0x58] sm:$0xff] %v1159
        %1192 = vst [vmem:[%s256 + $0x60] sm:$0xff] %v1160
        %1193 = vst [vmem:[%s256 + $0x68] sm:$0xff] %v1161
        %1194 = vst [vmem:[%s256 + $0x70] sm:$0xff] %v1162
        %1195 = vst [vmem:[%s256 + $0x78] sm:$0xff] %v1163
        %1196 = vst [vmem:[%s256 + $0x80] sm:$0xff] %v1164
        %1197 = vst [vmem:[%s256 + $0x88] sm:$0xff] %v1165
        %1198 = vst [vmem:[%s256 + $0x90] sm:$0xff] %v1166
        %1199 = vst [vmem:[%s256 + $0x98] sm:$0xff] %v1167
        %1200 = vst [vmem:[%s256 + $0xa0] sm:$0xff] %v1168
        %1201 = vst [vmem:[%s256 + $0xa8] sm:$0xff] %v1169
        %1202 = vst [vmem:[%s256 + $0xb0] sm:$0xff] %v1170
        %1203 = vst [vmem:[%s256 + $0xb8] sm:$0xff] %v1171
        %1204 = vst [vmem:[%s256 + $0xc0] sm:$0xff] %v1172
        %1205 = vst [vmem:[%s256 + $0xc8] sm:$0xff] %v1173
        %1206 = vst [vmem:[%s256 + $0xd0] sm:$0xff] %v1174
        %1207 = vst [vmem:[%s256 + $0xd8] sm:$0xff] %v1175
        %1208 = vst [vmem:[%s256 + $0xe0] sm:$0xff] %v1176
        %1209 = vst [vmem:[%s256 + $0xe8] sm:$0xff] %v1177
        %1210 = vst [vmem:[%s256 + $0xf0] sm:$0xff] %v1178
        %1211 = vst [vmem:[%s256 + $0xf8] sm:$0xff] %v1179
        %s1212 = sand.u32 %s142, 1
        %s1213 = scalar_lea.sflag [#allocation3], %s1212
        %s1214 = sand.u32 %s142, 1
        %s1215 = smul.addr %s1214, 256
        %s1216 = scalar_lea.vmem [#allocation2], %s1215
        %s1217 = sand.u32 %s168, 1
        %s1218 = scalar_lea.sflag [#allocation5], %s1217
        %s1219 = sand.u32 %s168, 1
        %s1220 = smul.addr %s1219, 256
        %s1221 = scalar_lea.vmem [#allocation4], %s1220
        // Predicated region
        $region41: #{tpu_custom_call.1} parent=39 // pred_check
          %p1222 = pneg %p152
        $region42: #{tpu_custom_call.1} parent=39 // pred_check_branch
          %1224 = sbr.rel (%p1222) target = $region44
        $region43: #{tpu_custom_call.1} parent=39 // pred_region
          %s1225 = smul.u32 16, %s24
          %s1227 = ssub.s32 4096, 4096
          %1228 = vsyncadd %s1213, %s1227
          %s1229 = smul.addr %s1225, 2
          %s1230 = smul.addr %s1229, 128
          %s1231 = scalar_lea.hbm %s5, %s1230
          %s1232 = sshll.u32 %s1216, 4
          %s1233 = int_to_ptr.vmem [resolvable:$true] %s1232
          %1238 = dma.vmem_to_hbm [thread:$0]  %s1233, 4096, %s1231, %s1213, 256, 256, 16
        $region44: #{tpu_custom_call.1} parent=39 // pred_fallthru
          _
        // Predicated region
        $region45: #{tpu_custom_call.1} parent=39 // pred_check
          %p1239 = pneg %p178
        $region46: #{tpu_custom_call.1} parent=39 // pred_check_branch
          %1241 = sbr.rel (%p1239) target = $region48
        $region47: #{tpu_custom_call.1} parent=39 // pred_region
          %s1242 = smul.u32 16, %s24
          %s1244 = ssub.s32 4096, 4096
          %1245 = vsyncadd %s1218, %s1244
          %s1246 = smul.addr %s1242, 2
          %s1247 = smul.addr %s1246, 128
          %s1248 = scalar_lea.hbm %s6, %s1247
          %s1249 = sshll.u32 %s1221, 4
          %s1250 = int_to_ptr.vmem [resolvable:$true] %s1249
          %1255 = dma.vmem_to_hbm [thread:$0]  %s1250, 4096, %s1248, %s1218, 256, 256, 16
        $region48: #{tpu_custom_call.1} parent=39 // pred_fallthru
          _
      $region40: #{tpu_custom_call.1} parent=5 // pred_fallthru
        _
      %p1256 = scmp.le.s32.totalorder 2, %s19
      // Predicated region
      $region49: #{tpu_custom_call.1} parent=5 // pred_check
        %p1257 = pneg %p1256
      $region50: #{tpu_custom_call.1} parent=5 // pred_check_branch
        %1259 = sbr.rel (%p1257) target = $region52
      $region51: #{tpu_custom_call.1} parent=5 // pred_region
        %s1260 = ssub.s32 %s19, 2
        // Predicated region
        $region53: #{tpu_custom_call.1} parent=51 // pred_check
          %p1261 = pneg %p158
        $region54: #{tpu_custom_call.1} parent=51 // pred_check_branch
          %1263 = sbr.rel (%p1261) target = $region56
        $region55: #{tpu_custom_call.1} parent=51 // pred_region
          %s1264 = sand.u32 %s143, 1
          %s1265 = scalar_lea.sflag [#allocation3], %s1264
          %s1266 = sand.u32 %s143, 1
          %s1267 = smul.addr %s1266, 256
          %s1268 = scalar_lea.vmem [#allocation2], %s1267
          %1269 = dma.done %s1265, 4096
        $region56: #{tpu_custom_call.1} parent=51 // pred_fallthru
          _
        // Predicated region
        $region57: #{tpu_custom_call.1} parent=51 // pred_check
          %p1270 = pneg %p184
        $region58: #{tpu_custom_call.1} parent=51 // pred_check_branch
          %1272 = sbr.rel (%p1270) target = $region60
        $region59: #{tpu_custom_call.1} parent=51 // pred_region
          %s1273 = sand.u32 %s169, 1
          %s1274 = scalar_lea.sflag [#allocation5], %s1273
          %s1275 = sand.u32 %s169, 1
          %s1276 = smul.addr %s1275, 256
          %s1277 = scalar_lea.vmem [#allocation4], %s1276
          %1278 = dma.done %s1274, 4096
        $region60: #{tpu_custom_call.1} parent=51 // pred_fallthru
          _
      $region52: #{tpu_custom_call.1} parent=5 // pred_fallthru
        _
    $region6: #{tpu_custom_call.1} parent=1 // loop_footer
      %s23 = sadd.s32 1, %s19
    $region7: #{tpu_custom_call.1} parent=1 // loop_footer_branch
      %18 = sbr.rel target = $region3
    $region8: #{tpu_custom_call.1} parent=1 // loop_exit
      _
    %1279 = vsyncpa [#allocation3], 1
    %s1280 = scalar_lea.sflag [#allocation3], 1
    %1281 = vsyncpa %s1280, 1
    %1282 = vsyncpa [#allocation5], 1
    %s1283 = scalar_lea.sflag [#allocation5], 1
    %1284 = vsyncpa %s1283, 1

</llo_original>
